<compile_context>
chip_gen: v5e
topology: v5e:2x2
jax: 0.10.0
libtpu: 0.0.40
codegen_flags: <defaults>
</compile_context>

<pallas_src>
import functools

import jax
import jax.numpy as jnp
from jax.experimental import pallas as pl
from jax.experimental.pallas import tpu as pltpu


def _lstm_decoder_kernel(x_ref,
                         wih0_ref, wrec_ref, b0_ref,
                         wih1_ref, b1_ref,
                         woutblk_ref, boutt_ref,
                         o_ref, *, seq_len):
    """Runs the full seq_len recurrence in one kernel invocation.

    x_ref:       (B, H)
    wih0_ref:    (H, 4H)                          b0_ref:   (1, 4H)  (b_ih0 + b_hh0)
    wrec_ref:    (2H, 8H) = blockdiag(w_hh0, w_hh1)
    wih1_ref:    (H, 4H)                          b1_ref:   (1, 4H)  (b_ih1 + b_hh1)
    woutblk_ref: (T*H, T*F) = blockdiag_T(w_out)  boutt_ref:(1, T*F) (b_out tiled)
    o_ref:       (B, T*F)  lane-dense output slab, batch-first.
    """
    f32 = jnp.float32
    B, H = x_ref.shape
    H4 = 4 * H
    TF = o_ref.shape[1]

    # ---- hoisted loop-invariants (loaded / computed once) ------------------
    wrec = wrec_ref[...]          # (2H, 8H)
    wih1 = wih1_ref[...]          # (H, 4H)

    # Layer-1 input projection is identical every timestep (input is x repeated).
    xproj = (jnp.dot(x_ref[...], wih0_ref[...], preferred_element_type=f32)
             + jnp.broadcast_to(b0_ref[...], (B, H4)))     # (B, 4H)
    b1_full = jnp.broadcast_to(b1_ref[...], (B, H4))       # (B, 4H)

    def cell(gates, c_prev):
        # One EUP sigmoid + one tanh push over the full 4H=128-lane gates vreg,
        # then slice (PyTorch gate order: i, f, g, o).
        sig = jax.nn.sigmoid(gates)
        th = jnp.tanh(gates)
        i = sig[:, 0 * H:1 * H]
        f = sig[:, 1 * H:2 * H]
        g = th[:, 2 * H:3 * H]
        o = sig[:, 3 * H:4 * H]
        c_new = f * c_prev + i * g
        h_new = o * jnp.tanh(c_new)
        return h_new, c_new

    z = jnp.zeros((B, H), f32)
    hcat = jnp.zeros((B, 2 * H), f32)   # carried [h1 | h2]
    c1, c2 = z, z

    # seq_len is small & static -> fully unrolled recurrence.
    # TODO(synk): for large seq_len, switch to lax.fori_loop carrying
    # (hcat, c1, c2) and write h2(t) into a VMEM scratch slab instead of a list.
    h2_slabs = []
    for _ in range(seq_len):
        # fused recurrent dot: first 4H cols -> layer-1 term, last 4H -> layer-2 term
        rec = jnp.dot(hcat, wrec, preferred_element_type=f32)       # (B, 8H)

        # layer 1
        h1, c1 = cell(xproj + rec[:, :H4], c1)

        # layer 2 (input is this step's h1; recurrent term precomputed in rec)
        gates2 = (jnp.dot(h1, wih1, preferred_element_type=f32)
                  + rec[:, H4:] + b1_full)
        h2, c2 = cell(gates2, c2)

        hcat = jnp.concatenate([h1, h2], axis=1)
        h2_slabs.append(h2)

    # ---- deferred output projection: one dot + one sigmoid + one store -----
    h_all = jnp.concatenate(h2_slabs, axis=1)                       # (B, T*H)
    out = jax.nn.sigmoid(
        jnp.dot(h_all, woutblk_ref[...], preferred_element_type=f32)
        + jnp.broadcast_to(boutt_ref[...], (B, TF)))                # (B, T*F)
    o_ref[...] = out.astype(o_ref.dtype)


def arae_decoder_forward(x, c, params, seq_len):
    """x: (B, hidden_dim) float32. Returns (B, seq_len, n_features + c_dim)."""
    del c  # unused by the PyTorch forward as well
    B, H = x.shape
    out_dim = params["w_out"].shape[1]

    # Light shape sanity (catches un-transposed PyTorch weight imports).
    assert params["w_ih0"].shape == (H, 4 * H)
    assert params["w_hh0"].shape == (H, 4 * H)
    assert params["w_ih1"].shape == (H, 4 * H)
    assert params["w_hh1"].shape == (H, 4 * H)
    assert params["w_out"].shape[0] == H

    # --- trace-time weight fusions (outside the kernel) ---------------------
    zH4 = jnp.zeros((H, 4 * H), jnp.float32)
    w_rec = jnp.concatenate(
        [jnp.concatenate([params["w_hh0"], zH4], axis=1),
         jnp.concatenate([zH4, params["w_hh1"]], axis=1)], axis=0)   # (2H, 8H)

    # blockdiag_T(w_out): (T*H, T*F); kron(I_T, W) puts W on the T diagonal blocks.
    w_out_blk = jnp.kron(jnp.eye(seq_len, dtype=jnp.float32), params["w_out"])
    b_out_t = jnp.tile(params["b_out"], (1, seq_len))                # (1, T*F)

    kernel = functools.partial(_lstm_decoder_kernel, seq_len=seq_len)
    vmem = pl.BlockSpec(memory_space=pltpu.MemorySpace.VMEM)

    # NOTE(v7x): for large B (>= ~16) add a batch grid axis with
    # dimension_semantics=("parallel",) to use both TensorCores; at B=2 the
    # per-grid-step overhead would dominate, so no grid is used here.
    out_slab = pl.pallas_call(
        kernel,
        out_shape=jax.ShapeDtypeStruct((B, seq_len * out_dim), jnp.float32),
        in_specs=[vmem] * 8,
        out_specs=vmem,
    )(x,
      params["w_ih0"], w_rec, params["b0"],
      params["w_ih1"], params["b1"],
      w_out_blk, b_out_t)

    # (B, T*F) -> (B, T, F): row-major reshape, already batch-first (no transpose).
    return out_slab.reshape(B, seq_len, out_dim)


def init_params(key, hidden_dim, n_features, c_dim):
    """Deterministic init mimicking PyTorch's uniform(-1/sqrt(H), 1/sqrt(H)).
    Weights stored pre-transposed as (in, out) for x @ W in the kernel;
    biases stored as b_ih + b_hh."""
    H = hidden_dim
    out_dim = n_features + c_dim
    k = 1.0 / jnp.sqrt(jnp.float32(H))
    keys = jax.random.split(key, 10)
    u = lambda kk, shape: jax.random.uniform(kk, shape, jnp.float32, -k, k)
    params = {
        "w_ih0": u(keys[0], (H, 4 * H)),
        "w_hh0": u(keys[1], (H, 4 * H)),
        "b0":    u(keys[2], (1, 4 * H)) + u(keys[3], (1, 4 * H)),  # b_ih + b_hh
        "w_ih1": u(keys[4], (H, 4 * H)),
        "w_hh1": u(keys[5], (H, 4 * H)),
        "b1":    u(keys[6], (1, 4 * H)) + u(keys[7], (1, 4 * H)),
        "w_out": u(keys[8], (H, out_dim)),
        "b_out": u(keys[9], (1, out_dim)),
    }
    return params


def reference_forward(x, params, seq_len):
    """Pure-JAX reference of the same math, for correctness checking."""
    B, H = x.shape

    def cell(inp, h, c, wih, whh, b):
        gates = inp @ wih + h @ whh + b
        i = jax.nn.sigmoid(gates[:, 0 * H:1 * H])
        f = jax.nn.sigmoid(gates[:, 1 * H:2 * H])
        g = jnp.tanh(gates[:, 2 * H:3 * H])
        o = jax.nn.sigmoid(gates[:, 3 * H:4 * H])
        c_new = f * c + i * g
        h_new = o * jnp.tanh(c_new)
        return h_new, c_new

    def step(carry, _):
        h1, c1, h2, c2 = carry
        h1, c1 = cell(x, h1, c1, params["w_ih0"], params["w_hh0"], params["b0"])
        h2, c2 = cell(h1, h2, c2, params["w_ih1"], params["w_hh1"], params["b1"])
        out = jax.nn.sigmoid(h2 @ params["w_out"] + params["b_out"])
        return (h1, c1, h2, c2), out

    z = jnp.zeros((B, H), jnp.float32)
    _, outs = jax.lax.scan(step, (z, z, z, z), None, length=seq_len)
    return jnp.transpose(outs, (1, 0, 2))  # (B, T, out_dim)


if __name__ == "__main__":
    # small shapes consistent with the module
    seq_len = 8
    n_features = 4
    hidden_dim = 32
    c_dim = 4
    batch = 2

    key = jax.random.PRNGKey(0)
    kp, kx, kc = jax.random.split(key, 3)
    params = init_params(kp, hidden_dim, n_features, c_dim)
    x = jax.random.normal(kx, (batch, hidden_dim), jnp.float32)
    c = jax.random.normal(kc, (batch, c_dim), jnp.float32)  # unused, as in PyTorch

    fwd = jax.jit(functools.partial(arae_decoder_forward, seq_len=seq_len))
    out = fwd(x, c, params)
    jax.block_until_ready(out)

    ref = reference_forward(x, params, seq_len)
    assert out.shape == (batch, seq_len, n_features + c_dim)
    assert jnp.allclose(out, ref, rtol=1e-5, atol=1e-5), "mismatch vs reference"

    print("KERNEL_OK")
</pallas_src>

<mosaic_0001>
module attributes {stable_mosaic.version = 11 : i64} {
  func.func @_lstm_decoder_kernel(%arg0: memref<2x32xf32, #tpu.memory_space<vmem>>, %arg1: memref<32x128xf32, #tpu.memory_space<vmem>>, %arg2: memref<64x256xf32, #tpu.memory_space<vmem>>, %arg3: memref<1x128xf32, #tpu.memory_space<vmem>>, %arg4: memref<32x128xf32, #tpu.memory_space<vmem>>, %arg5: memref<1x128xf32, #tpu.memory_space<vmem>>, %arg6: memref<256x64xf32, #tpu.memory_space<vmem>>, %arg7: memref<1x64xf32, #tpu.memory_space<vmem>>, %arg8: memref<2x64xf32, #tpu.memory_space<vmem>>) attributes {dimension_semantics = [], scalar_prefetch = 0 : i64, scratch_operands = 0 : i64, tpu.core_type = #tpu.core_type<tc>} {
    %c0 = arith.constant 0 : index
    %c0_0 = arith.constant 0 : index
    %0 = vector.load %arg2[%c0, %c0_0] : memref<64x256xf32, #tpu.memory_space<vmem>>, vector<64x256xf32>
    %c0_1 = arith.constant 0 : index
    %c0_2 = arith.constant 0 : index
    %1 = vector.load %arg4[%c0_1, %c0_2] : memref<32x128xf32, #tpu.memory_space<vmem>>, vector<32x128xf32>
    %c0_3 = arith.constant 0 : index
    %c0_4 = arith.constant 0 : index
    %2 = vector.load %arg0[%c0_3, %c0_4] : memref<2x32xf32, #tpu.memory_space<vmem>>, vector<2x32xf32>
    %c0_5 = arith.constant 0 : index
    %c0_6 = arith.constant 0 : index
    %3 = vector.load %arg1[%c0_5, %c0_6] : memref<32x128xf32, #tpu.memory_space<vmem>>, vector<32x128xf32>
    %cst = arith.constant dense<0.000000e+00> : vector<2x128xf32>
    %4 = tpu.matmul %2, %3, %cst {dimension_numbers = #tpu.dot_dimension_numbers<[1], [0], [0], [1], [0, 0, 1, 1], [], []>} : vector<2x32xf32>, vector<32x128xf32>, vector<2x128xf32> -> vector<2x128xf32>
    %c0_7 = arith.constant 0 : index
    %c0_8 = arith.constant 0 : index
    %5 = vector.load %arg3[%c0_7, %c0_8] : memref<1x128xf32, #tpu.memory_space<vmem>>, vector<1x128xf32>
    %6 = vector.shape_cast %5 : vector<1x128xf32> to vector<1x128xf32>
    %7 = vector.broadcast %6 : vector<1x128xf32> to vector<2x128xf32>
    %8 = arith.addf %4, %7 : vector<2x128xf32>
    %c0_9 = arith.constant 0 : index
    %c0_10 = arith.constant 0 : index
    %9 = vector.load %arg5[%c0_9, %c0_10] : memref<1x128xf32, #tpu.memory_space<vmem>>, vector<1x128xf32>
    %10 = vector.shape_cast %9 : vector<1x128xf32> to vector<1x128xf32>
    %11 = vector.broadcast %10 : vector<1x128xf32> to vector<2x128xf32>
    %cst_11 = arith.constant 0.000000e+00 : f32
    %12 = vector.broadcast %cst_11 : f32 to vector<2x32xf32>
    %cst_12 = arith.constant 0.000000e+00 : f32
    %13 = vector.broadcast %cst_12 : f32 to vector<2x64xf32>
    %cst_13 = arith.constant dense<0.000000e+00> : vector<2x256xf32>
    %14 = tpu.matmul %13, %0, %cst_13 {dimension_numbers = #tpu.dot_dimension_numbers<[1], [0], [0], [1], [0, 0, 1, 1], [], []>} : vector<2x64xf32>, vector<64x256xf32>, vector<2x256xf32> -> vector<2x256xf32>
    %15 = vector.extract_strided_slice %14 {offsets = [0, 0], sizes = [2, 128], strides = [1, 1]} : vector<2x256xf32> to vector<2x128xf32>
    %16 = arith.addf %8, %15 : vector<2x128xf32>
    %17 = arith.negf %16 : vector<2x128xf32>
    %18 = math.exp %17 : vector<2x128xf32>
    %cst_14 = arith.constant 1.000000e+00 : f32
    %19 = vector.broadcast %cst_14 : f32 to vector<2x128xf32>
    %20 = arith.addf %19, %18 : vector<2x128xf32>
    %21 = arith.divf %19, %20 : vector<2x128xf32>
    %22 = math.tanh %16 : vector<2x128xf32>
    %23 = vector.extract_strided_slice %21 {offsets = [0, 0], sizes = [2, 32], strides = [1, 1]} : vector<2x128xf32> to vector<2x32xf32>
    %24 = vector.extract_strided_slice %21 {offsets = [0, 32], sizes = [2, 32], strides = [1, 1]} : vector<2x128xf32> to vector<2x32xf32>
    %25 = vector.extract_strided_slice %22 {offsets = [0, 64], sizes = [2, 32], strides = [1, 1]} : vector<2x128xf32> to vector<2x32xf32>
    %26 = vector.extract_strided_slice %21 {offsets = [0, 96], sizes = [2, 32], strides = [1, 1]} : vector<2x128xf32> to vector<2x32xf32>
    %27 = arith.mulf %24, %12 : vector<2x32xf32>
    %28 = arith.mulf %23, %25 : vector<2x32xf32>
    %29 = arith.addf %27, %28 : vector<2x32xf32>
    %30 = math.tanh %29 : vector<2x32xf32>
    %31 = arith.mulf %26, %30 : vector<2x32xf32>
    %cst_15 = arith.constant dense<0.000000e+00> : vector<2x128xf32>
    %32 = tpu.matmul %31, %1, %cst_15 {dimension_numbers = #tpu.dot_dimension_numbers<[1], [0], [0], [1], [0, 0, 1, 1], [], []>} : vector<2x32xf32>, vector<32x128xf32>, vector<2x128xf32> -> vector<2x128xf32>
    %33 = vector.extract_strided_slice %14 {offsets = [0, 128], sizes = [2, 128], strides = [1, 1]} : vector<2x256xf32> to vector<2x128xf32>
    %34 = arith.addf %32, %33 : vector<2x128xf32>
    %35 = arith.addf %34, %11 : vector<2x128xf32>
    %36 = arith.negf %35 : vector<2x128xf32>
    %37 = math.exp %36 : vector<2x128xf32>
    %cst_16 = arith.constant 1.000000e+00 : f32
    %38 = vector.broadcast %cst_16 : f32 to vector<2x128xf32>
    %39 = arith.addf %38, %37 : vector<2x128xf32>
    %40 = arith.divf %38, %39 : vector<2x128xf32>
    %41 = math.tanh %35 : vector<2x128xf32>
    %42 = vector.extract_strided_slice %40 {offsets = [0, 0], sizes = [2, 32], strides = [1, 1]} : vector<2x128xf32> to vector<2x32xf32>
    %43 = vector.extract_strided_slice %40 {offsets = [0, 32], sizes = [2, 32], strides = [1, 1]} : vector<2x128xf32> to vector<2x32xf32>
    %44 = vector.extract_strided_slice %41 {offsets = [0, 64], sizes = [2, 32], strides = [1, 1]} : vector<2x128xf32> to vector<2x32xf32>
    %45 = vector.extract_strided_slice %40 {offsets = [0, 96], sizes = [2, 32], strides = [1, 1]} : vector<2x128xf32> to vector<2x32xf32>
    %46 = arith.mulf %43, %12 : vector<2x32xf32>
    %47 = arith.mulf %42, %44 : vector<2x32xf32>
    %48 = arith.addf %46, %47 : vector<2x32xf32>
    %49 = math.tanh %48 : vector<2x32xf32>
    %50 = arith.mulf %45, %49 : vector<2x32xf32>
    %51 = tpu.concatenate %31, %50 in 1 : vector<2x32xf32>, vector<2x32xf32> -> vector<2x64xf32>
    %cst_17 = arith.constant dense<0.000000e+00> : vector<2x256xf32>
    %52 = tpu.matmul %51, %0, %cst_17 {dimension_numbers = #tpu.dot_dimension_numbers<[1], [0], [0], [1], [0, 0, 1, 1], [], []>} : vector<2x64xf32>, vector<64x256xf32>, vector<2x256xf32> -> vector<2x256xf32>
    %53 = vector.extract_strided_slice %52 {offsets = [0, 0], sizes = [2, 128], strides = [1, 1]} : vector<2x256xf32> to vector<2x128xf32>
    %54 = arith.addf %8, %53 : vector<2x128xf32>
    %55 = arith.negf %54 : vector<2x128xf32>
    %56 = math.exp %55 : vector<2x128xf32>
    %cst_18 = arith.constant 1.000000e+00 : f32
    %57 = vector.broadcast %cst_18 : f32 to vector<2x128xf32>
    %58 = arith.addf %57, %56 : vector<2x128xf32>
    %59 = arith.divf %57, %58 : vector<2x128xf32>
    %60 = math.tanh %54 : vector<2x128xf32>
    %61 = vector.extract_strided_slice %59 {offsets = [0, 0], sizes = [2, 32], strides = [1, 1]} : vector<2x128xf32> to vector<2x32xf32>
    %62 = vector.extract_strided_slice %59 {offsets = [0, 32], sizes = [2, 32], strides = [1, 1]} : vector<2x128xf32> to vector<2x32xf32>
    %63 = vector.extract_strided_slice %60 {offsets = [0, 64], sizes = [2, 32], strides = [1, 1]} : vector<2x128xf32> to vector<2x32xf32>
    %64 = vector.extract_strided_slice %59 {offsets = [0, 96], sizes = [2, 32], strides = [1, 1]} : vector<2x128xf32> to vector<2x32xf32>
    %65 = arith.mulf %62, %29 : vector<2x32xf32>
    %66 = arith.mulf %61, %63 : vector<2x32xf32>
    %67 = arith.addf %65, %66 : vector<2x32xf32>
    %68 = math.tanh %67 : vector<2x32xf32>
    %69 = arith.mulf %64, %68 : vector<2x32xf32>
    %cst_19 = arith.constant dense<0.000000e+00> : vector<2x128xf32>
    %70 = tpu.matmul %69, %1, %cst_19 {dimension_numbers = #tpu.dot_dimension_numbers<[1], [0], [0], [1], [0, 0, 1, 1], [], []>} : vector<2x32xf32>, vector<32x128xf32>, vector<2x128xf32> -> vector<2x128xf32>
    %71 = vector.extract_strided_slice %52 {offsets = [0, 128], sizes = [2, 128], strides = [1, 1]} : vector<2x256xf32> to vector<2x128xf32>
    %72 = arith.addf %70, %71 : vector<2x128xf32>
    %73 = arith.addf %72, %11 : vector<2x128xf32>
    %74 = arith.negf %73 : vector<2x128xf32>
    %75 = math.exp %74 : vector<2x128xf32>
    %cst_20 = arith.constant 1.000000e+00 : f32
    %76 = vector.broadcast %cst_20 : f32 to vector<2x128xf32>
    %77 = arith.addf %76, %75 : vector<2x128xf32>
    %78 = arith.divf %76, %77 : vector<2x128xf32>
    %79 = math.tanh %73 : vector<2x128xf32>
    %80 = vector.extract_strided_slice %78 {offsets = [0, 0], sizes = [2, 32], strides = [1, 1]} : vector<2x128xf32> to vector<2x32xf32>
    %81 = vector.extract_strided_slice %78 {offsets = [0, 32], sizes = [2, 32], strides = [1, 1]} : vector<2x128xf32> to vector<2x32xf32>
    %82 = vector.extract_strided_slice %79 {offsets = [0, 64], sizes = [2, 32], strides = [1, 1]} : vector<2x128xf32> to vector<2x32xf32>
    %83 = vector.extract_strided_slice %78 {offsets = [0, 96], sizes = [2, 32], strides = [1, 1]} : vector<2x128xf32> to vector<2x32xf32>
    %84 = arith.mulf %81, %48 : vector<2x32xf32>
    %85 = arith.mulf %80, %82 : vector<2x32xf32>
    %86 = arith.addf %84, %85 : vector<2x32xf32>
    %87 = math.tanh %86 : vector<2x32xf32>
    %88 = arith.mulf %83, %87 : vector<2x32xf32>
    %89 = tpu.concatenate %69, %88 in 1 : vector<2x32xf32>, vector<2x32xf32> -> vector<2x64xf32>
    %cst_21 = arith.constant dense<0.000000e+00> : vector<2x256xf32>
    %90 = tpu.matmul %89, %0, %cst_21 {dimension_numbers = #tpu.dot_dimension_numbers<[1], [0], [0], [1], [0, 0, 1, 1], [], []>} : vector<2x64xf32>, vector<64x256xf32>, vector<2x256xf32> -> vector<2x256xf32>
    %91 = vector.extract_strided_slice %90 {offsets = [0, 0], sizes = [2, 128], strides = [1, 1]} : vector<2x256xf32> to vector<2x128xf32>
    %92 = arith.addf %8, %91 : vector<2x128xf32>
    %93 = arith.negf %92 : vector<2x128xf32>
    %94 = math.exp %93 : vector<2x128xf32>
    %cst_22 = arith.constant 1.000000e+00 : f32
    %95 = vector.broadcast %cst_22 : f32 to vector<2x128xf32>
    %96 = arith.addf %95, %94 : vector<2x128xf32>
    %97 = arith.divf %95, %96 : vector<2x128xf32>
    %98 = math.tanh %92 : vector<2x128xf32>
    %99 = vector.extract_strided_slice %97 {offsets = [0, 0], sizes = [2, 32], strides = [1, 1]} : vector<2x128xf32> to vector<2x32xf32>
    %100 = vector.extract_strided_slice %97 {offsets = [0, 32], sizes = [2, 32], strides = [1, 1]} : vector<2x128xf32> to vector<2x32xf32>
    %101 = vector.extract_strided_slice %98 {offsets = [0, 64], sizes = [2, 32], strides = [1, 1]} : vector<2x128xf32> to vector<2x32xf32>
    %102 = vector.extract_strided_slice %97 {offsets = [0, 96], sizes = [2, 32], strides = [1, 1]} : vector<2x128xf32> to vector<2x32xf32>
    %103 = arith.mulf %100, %67 : vector<2x32xf32>
    %104 = arith.mulf %99, %101 : vector<2x32xf32>
    %105 = arith.addf %103, %104 : vector<2x32xf32>
    %106 = math.tanh %105 : vector<2x32xf32>
    %107 = arith.mulf %102, %106 : vector<2x32xf32>
    %cst_23 = arith.constant dense<0.000000e+00> : vector<2x128xf32>
    %108 = tpu.matmul %107, %1, %cst_23 {dimension_numbers = #tpu.dot_dimension_numbers<[1], [0], [0], [1], [0, 0, 1, 1], [], []>} : vector<2x32xf32>, vector<32x128xf32>, vector<2x128xf32> -> vector<2x128xf32>
    %109 = vector.extract_strided_slice %90 {offsets = [0, 128], sizes = [2, 128], strides = [1, 1]} : vector<2x256xf32> to vector<2x128xf32>
    %110 = arith.addf %108, %109 : vector<2x128xf32>
    %111 = arith.addf %110, %11 : vector<2x128xf32>
    %112 = arith.negf %111 : vector<2x128xf32>
    %113 = math.exp %112 : vector<2x128xf32>
    %cst_24 = arith.constant 1.000000e+00 : f32
    %114 = vector.broadcast %cst_24 : f32 to vector<2x128xf32>
    %115 = arith.addf %114, %113 : vector<2x128xf32>
    %116 = arith.divf %114, %115 : vector<2x128xf32>
    %117 = math.tanh %111 : vector<2x128xf32>
    %118 = vector.extract_strided_slice %116 {offsets = [0, 0], sizes = [2, 32], strides = [1, 1]} : vector<2x128xf32> to vector<2x32xf32>
    %119 = vector.extract_strided_slice %116 {offsets = [0, 32], sizes = [2, 32], strides = [1, 1]} : vector<2x128xf32> to vector<2x32xf32>
    %120 = vector.extract_strided_slice %117 {offsets = [0, 64], sizes = [2, 32], strides = [1, 1]} : vector<2x128xf32> to vector<2x32xf32>
    %121 = vector.extract_strided_slice %116 {offsets = [0, 96], sizes = [2, 32], strides = [1, 1]} : vector<2x128xf32> to vector<2x32xf32>
    %122 = arith.mulf %119, %86 : vector<2x32xf32>
    %123 = arith.mulf %118, %120 : vector<2x32xf32>
    %124 = arith.addf %122, %123 : vector<2x32xf32>
    %125 = math.tanh %124 : vector<2x32xf32>
    %126 = arith.mulf %121, %125 : vector<2x32xf32>
    %127 = tpu.concatenate %107, %126 in 1 : vector<2x32xf32>, vector<2x32xf32> -> vector<2x64xf32>
    %cst_25 = arith.constant dense<0.000000e+00> : vector<2x256xf32>
    %128 = tpu.matmul %127, %0, %cst_25 {dimension_numbers = #tpu.dot_dimension_numbers<[1], [0], [0], [1], [0, 0, 1, 1], [], []>} : vector<2x64xf32>, vector<64x256xf32>, vector<2x256xf32> -> vector<2x256xf32>
    %129 = vector.extract_strided_slice %128 {offsets = [0, 0], sizes = [2, 128], strides = [1, 1]} : vector<2x256xf32> to vector<2x128xf32>
    %130 = arith.addf %8, %129 : vector<2x128xf32>
    %131 = arith.negf %130 : vector<2x128xf32>
    %132 = math.exp %131 : vector<2x128xf32>
    %cst_26 = arith.constant 1.000000e+00 : f32
    %133 = vector.broadcast %cst_26 : f32 to vector<2x128xf32>
    %134 = arith.addf %133, %132 : vector<2x128xf32>
    %135 = arith.divf %133, %134 : vector<2x128xf32>
    %136 = math.tanh %130 : vector<2x128xf32>
    %137 = vector.extract_strided_slice %135 {offsets = [0, 0], sizes = [2, 32], strides = [1, 1]} : vector<2x128xf32> to vector<2x32xf32>
    %138 = vector.extract_strided_slice %135 {offsets = [0, 32], sizes = [2, 32], strides = [1, 1]} : vector<2x128xf32> to vector<2x32xf32>
    %139 = vector.extract_strided_slice %136 {offsets = [0, 64], sizes = [2, 32], strides = [1, 1]} : vector<2x128xf32> to vector<2x32xf32>
    %140 = vector.extract_strided_slice %135 {offsets = [0, 96], sizes = [2, 32], strides = [1, 1]} : vector<2x128xf32> to vector<2x32xf32>
    %141 = arith.mulf %138, %105 : vector<2x32xf32>
    %142 = arith.mulf %137, %139 : vector<2x32xf32>
    %143 = arith.addf %141, %142 : vector<2x32xf32>
    %144 = math.tanh %143 : vector<2x32xf32>
    %145 = arith.mulf %140, %144 : vector<2x32xf32>
    %cst_27 = arith.constant dense<0.000000e+00> : vector<2x128xf32>
    %146 = tpu.matmul %145, %1, %cst_27 {dimension_numbers = #tpu.dot_dimension_numbers<[1], [0], [0], [1], [0, 0, 1, 1], [], []>} : vector<2x32xf32>, vector<32x128xf32>, vector<2x128xf32> -> vector<2x128xf32>
    %147 = vector.extract_strided_slice %128 {offsets = [0, 128], sizes = [2, 128], strides = [1, 1]} : vector<2x256xf32> to vector<2x128xf32>
    %148 = arith.addf %146, %147 : vector<2x128xf32>
    %149 = arith.addf %148, %11 : vector<2x128xf32>
    %150 = arith.negf %149 : vector<2x128xf32>
    %151 = math.exp %150 : vector<2x128xf32>
    %cst_28 = arith.constant 1.000000e+00 : f32
    %152 = vector.broadcast %cst_28 : f32 to vector<2x128xf32>
    %153 = arith.addf %152, %151 : vector<2x128xf32>
    %154 = arith.divf %152, %153 : vector<2x128xf32>
    %155 = math.tanh %149 : vector<2x128xf32>
    %156 = vector.extract_strided_slice %154 {offsets = [0, 0], sizes = [2, 32], strides = [1, 1]} : vector<2x128xf32> to vector<2x32xf32>
    %157 = vector.extract_strided_slice %154 {offsets = [0, 32], sizes = [2, 32], strides = [1, 1]} : vector<2x128xf32> to vector<2x32xf32>
    %158 = vector.extract_strided_slice %155 {offsets = [0, 64], sizes = [2, 32], strides = [1, 1]} : vector<2x128xf32> to vector<2x32xf32>
    %159 = vector.extract_strided_slice %154 {offsets = [0, 96], sizes = [2, 32], strides = [1, 1]} : vector<2x128xf32> to vector<2x32xf32>
    %160 = arith.mulf %157, %124 : vector<2x32xf32>
    %161 = arith.mulf %156, %158 : vector<2x32xf32>
    %162 = arith.addf %160, %161 : vector<2x32xf32>
    %163 = math.tanh %162 : vector<2x32xf32>
    %164 = arith.mulf %159, %163 : vector<2x32xf32>
    %165 = tpu.concatenate %145, %164 in 1 : vector<2x32xf32>, vector<2x32xf32> -> vector<2x64xf32>
    %cst_29 = arith.constant dense<0.000000e+00> : vector<2x256xf32>
    %166 = tpu.matmul %165, %0, %cst_29 {dimension_numbers = #tpu.dot_dimension_numbers<[1], [0], [0], [1], [0, 0, 1, 1], [], []>} : vector<2x64xf32>, vector<64x256xf32>, vector<2x256xf32> -> vector<2x256xf32>
    %167 = vector.extract_strided_slice %166 {offsets = [0, 0], sizes = [2, 128], strides = [1, 1]} : vector<2x256xf32> to vector<2x128xf32>
    %168 = arith.addf %8, %167 : vector<2x128xf32>
    %169 = arith.negf %168 : vector<2x128xf32>
    %170 = math.exp %169 : vector<2x128xf32>
    %cst_30 = arith.constant 1.000000e+00 : f32
    %171 = vector.broadcast %cst_30 : f32 to vector<2x128xf32>
    %172 = arith.addf %171, %170 : vector<2x128xf32>
    %173 = arith.divf %171, %172 : vector<2x128xf32>
    %174 = math.tanh %168 : vector<2x128xf32>
    %175 = vector.extract_strided_slice %173 {offsets = [0, 0], sizes = [2, 32], strides = [1, 1]} : vector<2x128xf32> to vector<2x32xf32>
    %176 = vector.extract_strided_slice %173 {offsets = [0, 32], sizes = [2, 32], strides = [1, 1]} : vector<2x128xf32> to vector<2x32xf32>
    %177 = vector.extract_strided_slice %174 {offsets = [0, 64], sizes = [2, 32], strides = [1, 1]} : vector<2x128xf32> to vector<2x32xf32>
    %178 = vector.extract_strided_slice %173 {offsets = [0, 96], sizes = [2, 32], strides = [1, 1]} : vector<2x128xf32> to vector<2x32xf32>
    %179 = arith.mulf %176, %143 : vector<2x32xf32>
    %180 = arith.mulf %175, %177 : vector<2x32xf32>
    %181 = arith.addf %179, %180 : vector<2x32xf32>
    %182 = math.tanh %181 : vector<2x32xf32>
    %183 = arith.mulf %178, %182 : vector<2x32xf32>
    %cst_31 = arith.constant dense<0.000000e+00> : vector<2x128xf32>
    %184 = tpu.matmul %183, %1, %cst_31 {dimension_numbers = #tpu.dot_dimension_numbers<[1], [0], [0], [1], [0, 0, 1, 1], [], []>} : vector<2x32xf32>, vector<32x128xf32>, vector<2x128xf32> -> vector<2x128xf32>
    %185 = vector.extract_strided_slice %166 {offsets = [0, 128], sizes = [2, 128], strides = [1, 1]} : vector<2x256xf32> to vector<2x128xf32>
    %186 = arith.addf %184, %185 : vector<2x128xf32>
    %187 = arith.addf %186, %11 : vector<2x128xf32>
    %188 = arith.negf %187 : vector<2x128xf32>
    %189 = math.exp %188 : vector<2x128xf32>
    %cst_32 = arith.constant 1.000000e+00 : f32
    %190 = vector.broadcast %cst_32 : f32 to vector<2x128xf32>
    %191 = arith.addf %190, %189 : vector<2x128xf32>
    %192 = arith.divf %190, %191 : vector<2x128xf32>
    %193 = math.tanh %187 : vector<2x128xf32>
    %194 = vector.extract_strided_slice %192 {offsets = [0, 0], sizes = [2, 32], strides = [1, 1]} : vector<2x128xf32> to vector<2x32xf32>
    %195 = vector.extract_strided_slice %192 {offsets = [0, 32], sizes = [2, 32], strides = [1, 1]} : vector<2x128xf32> to vector<2x32xf32>
    %196 = vector.extract_strided_slice %193 {offsets = [0, 64], sizes = [2, 32], strides = [1, 1]} : vector<2x128xf32> to vector<2x32xf32>
    %197 = vector.extract_strided_slice %192 {offsets = [0, 96], sizes = [2, 32], strides = [1, 1]} : vector<2x128xf32> to vector<2x32xf32>
    %198 = arith.mulf %195, %162 : vector<2x32xf32>
    %199 = arith.mulf %194, %196 : vector<2x32xf32>
    %200 = arith.addf %198, %199 : vector<2x32xf32>
    %201 = math.tanh %200 : vector<2x32xf32>
    %202 = arith.mulf %197, %201 : vector<2x32xf32>
    %203 = tpu.concatenate %183, %202 in 1 : vector<2x32xf32>, vector<2x32xf32> -> vector<2x64xf32>
    %cst_33 = arith.constant dense<0.000000e+00> : vector<2x256xf32>
    %204 = tpu.matmul %203, %0, %cst_33 {dimension_numbers = #tpu.dot_dimension_numbers<[1], [0], [0], [1], [0, 0, 1, 1], [], []>} : vector<2x64xf32>, vector<64x256xf32>, vector<2x256xf32> -> vector<2x256xf32>
    %205 = vector.extract_strided_slice %204 {offsets = [0, 0], sizes = [2, 128], strides = [1, 1]} : vector<2x256xf32> to vector<2x128xf32>
    %206 = arith.addf %8, %205 : vector<2x128xf32>
    %207 = arith.negf %206 : vector<2x128xf32>
    %208 = math.exp %207 : vector<2x128xf32>
    %cst_34 = arith.constant 1.000000e+00 : f32
    %209 = vector.broadcast %cst_34 : f32 to vector<2x128xf32>
    %210 = arith.addf %209, %208 : vector<2x128xf32>
    %211 = arith.divf %209, %210 : vector<2x128xf32>
    %212 = math.tanh %206 : vector<2x128xf32>
    %213 = vector.extract_strided_slice %211 {offsets = [0, 0], sizes = [2, 32], strides = [1, 1]} : vector<2x128xf32> to vector<2x32xf32>
    %214 = vector.extract_strided_slice %211 {offsets = [0, 32], sizes = [2, 32], strides = [1, 1]} : vector<2x128xf32> to vector<2x32xf32>
    %215 = vector.extract_strided_slice %212 {offsets = [0, 64], sizes = [2, 32], strides = [1, 1]} : vector<2x128xf32> to vector<2x32xf32>
    %216 = vector.extract_strided_slice %211 {offsets = [0, 96], sizes = [2, 32], strides = [1, 1]} : vector<2x128xf32> to vector<2x32xf32>
    %217 = arith.mulf %214, %181 : vector<2x32xf32>
    %218 = arith.mulf %213, %215 : vector<2x32xf32>
    %219 = arith.addf %217, %218 : vector<2x32xf32>
    %220 = math.tanh %219 : vector<2x32xf32>
    %221 = arith.mulf %216, %220 : vector<2x32xf32>
    %cst_35 = arith.constant dense<0.000000e+00> : vector<2x128xf32>
    %222 = tpu.matmul %221, %1, %cst_35 {dimension_numbers = #tpu.dot_dimension_numbers<[1], [0], [0], [1], [0, 0, 1, 1], [], []>} : vector<2x32xf32>, vector<32x128xf32>, vector<2x128xf32> -> vector<2x128xf32>
    %223 = vector.extract_strided_slice %204 {offsets = [0, 128], sizes = [2, 128], strides = [1, 1]} : vector<2x256xf32> to vector<2x128xf32>
    %224 = arith.addf %222, %223 : vector<2x128xf32>
    %225 = arith.addf %224, %11 : vector<2x128xf32>
    %226 = arith.negf %225 : vector<2x128xf32>
    %227 = math.exp %226 : vector<2x128xf32>
    %cst_36 = arith.constant 1.000000e+00 : f32
    %228 = vector.broadcast %cst_36 : f32 to vector<2x128xf32>
    %229 = arith.addf %228, %227 : vector<2x128xf32>
    %230 = arith.divf %228, %229 : vector<2x128xf32>
    %231 = math.tanh %225 : vector<2x128xf32>
    %232 = vector.extract_strided_slice %230 {offsets = [0, 0], sizes = [2, 32], strides = [1, 1]} : vector<2x128xf32> to vector<2x32xf32>
    %233 = vector.extract_strided_slice %230 {offsets = [0, 32], sizes = [2, 32], strides = [1, 1]} : vector<2x128xf32> to vector<2x32xf32>
    %234 = vector.extract_strided_slice %231 {offsets = [0, 64], sizes = [2, 32], strides = [1, 1]} : vector<2x128xf32> to vector<2x32xf32>
    %235 = vector.extract_strided_slice %230 {offsets = [0, 96], sizes = [2, 32], strides = [1, 1]} : vector<2x128xf32> to vector<2x32xf32>
    %236 = arith.mulf %233, %200 : vector<2x32xf32>
    %237 = arith.mulf %232, %234 : vector<2x32xf32>
    %238 = arith.addf %236, %237 : vector<2x32xf32>
    %239 = math.tanh %238 : vector<2x32xf32>
    %240 = arith.mulf %235, %239 : vector<2x32xf32>
    %241 = tpu.concatenate %221, %240 in 1 : vector<2x32xf32>, vector<2x32xf32> -> vector<2x64xf32>
    %cst_37 = arith.constant dense<0.000000e+00> : vector<2x256xf32>
    %242 = tpu.matmul %241, %0, %cst_37 {dimension_numbers = #tpu.dot_dimension_numbers<[1], [0], [0], [1], [0, 0, 1, 1], [], []>} : vector<2x64xf32>, vector<64x256xf32>, vector<2x256xf32> -> vector<2x256xf32>
    %243 = vector.extract_strided_slice %242 {offsets = [0, 0], sizes = [2, 128], strides = [1, 1]} : vector<2x256xf32> to vector<2x128xf32>
    %244 = arith.addf %8, %243 : vector<2x128xf32>
    %245 = arith.negf %244 : vector<2x128xf32>
    %246 = math.exp %245 : vector<2x128xf32>
    %cst_38 = arith.constant 1.000000e+00 : f32
    %247 = vector.broadcast %cst_38 : f32 to vector<2x128xf32>
    %248 = arith.addf %247, %246 : vector<2x128xf32>
    %249 = arith.divf %247, %248 : vector<2x128xf32>
    %250 = math.tanh %244 : vector<2x128xf32>
    %251 = vector.extract_strided_slice %249 {offsets = [0, 0], sizes = [2, 32], strides = [1, 1]} : vector<2x128xf32> to vector<2x32xf32>
    %252 = vector.extract_strided_slice %249 {offsets = [0, 32], sizes = [2, 32], strides = [1, 1]} : vector<2x128xf32> to vector<2x32xf32>
    %253 = vector.extract_strided_slice %250 {offsets = [0, 64], sizes = [2, 32], strides = [1, 1]} : vector<2x128xf32> to vector<2x32xf32>
    %254 = vector.extract_strided_slice %249 {offsets = [0, 96], sizes = [2, 32], strides = [1, 1]} : vector<2x128xf32> to vector<2x32xf32>
    %255 = arith.mulf %252, %219 : vector<2x32xf32>
    %256 = arith.mulf %251, %253 : vector<2x32xf32>
    %257 = arith.addf %255, %256 : vector<2x32xf32>
    %258 = math.tanh %257 : vector<2x32xf32>
    %259 = arith.mulf %254, %258 : vector<2x32xf32>
    %cst_39 = arith.constant dense<0.000000e+00> : vector<2x128xf32>
    %260 = tpu.matmul %259, %1, %cst_39 {dimension_numbers = #tpu.dot_dimension_numbers<[1], [0], [0], [1], [0, 0, 1, 1], [], []>} : vector<2x32xf32>, vector<32x128xf32>, vector<2x128xf32> -> vector<2x128xf32>
    %261 = vector.extract_strided_slice %242 {offsets = [0, 128], sizes = [2, 128], strides = [1, 1]} : vector<2x256xf32> to vector<2x128xf32>
    %262 = arith.addf %260, %261 : vector<2x128xf32>
    %263 = arith.addf %262, %11 : vector<2x128xf32>
    %264 = arith.negf %263 : vector<2x128xf32>
    %265 = math.exp %264 : vector<2x128xf32>
    %cst_40 = arith.constant 1.000000e+00 : f32
    %266 = vector.broadcast %cst_40 : f32 to vector<2x128xf32>
    %267 = arith.addf %266, %265 : vector<2x128xf32>
    %268 = arith.divf %266, %267 : vector<2x128xf32>
    %269 = math.tanh %263 : vector<2x128xf32>
    %270 = vector.extract_strided_slice %268 {offsets = [0, 0], sizes = [2, 32], strides = [1, 1]} : vector<2x128xf32> to vector<2x32xf32>
    %271 = vector.extract_strided_slice %268 {offsets = [0, 32], sizes = [2, 32], strides = [1, 1]} : vector<2x128xf32> to vector<2x32xf32>
    %272 = vector.extract_strided_slice %269 {offsets = [0, 64], sizes = [2, 32], strides = [1, 1]} : vector<2x128xf32> to vector<2x32xf32>
    %273 = vector.extract_strided_slice %268 {offsets = [0, 96], sizes = [2, 32], strides = [1, 1]} : vector<2x128xf32> to vector<2x32xf32>
    %274 = arith.mulf %271, %238 : vector<2x32xf32>
    %275 = arith.mulf %270, %272 : vector<2x32xf32>
    %276 = arith.addf %274, %275 : vector<2x32xf32>
    %277 = math.tanh %276 : vector<2x32xf32>
    %278 = arith.mulf %273, %277 : vector<2x32xf32>
    %279 = tpu.concatenate %259, %278 in 1 : vector<2x32xf32>, vector<2x32xf32> -> vector<2x64xf32>
    %cst_41 = arith.constant dense<0.000000e+00> : vector<2x256xf32>
    %280 = tpu.matmul %279, %0, %cst_41 {dimension_numbers = #tpu.dot_dimension_numbers<[1], [0], [0], [1], [0, 0, 1, 1], [], []>} : vector<2x64xf32>, vector<64x256xf32>, vector<2x256xf32> -> vector<2x256xf32>
    %281 = vector.extract_strided_slice %280 {offsets = [0, 0], sizes = [2, 128], strides = [1, 1]} : vector<2x256xf32> to vector<2x128xf32>
    %282 = arith.addf %8, %281 : vector<2x128xf32>
    %283 = arith.negf %282 : vector<2x128xf32>
    %284 = math.exp %283 : vector<2x128xf32>
    %cst_42 = arith.constant 1.000000e+00 : f32
    %285 = vector.broadcast %cst_42 : f32 to vector<2x128xf32>
    %286 = arith.addf %285, %284 : vector<2x128xf32>
    %287 = arith.divf %285, %286 : vector<2x128xf32>
    %288 = math.tanh %282 : vector<2x128xf32>
    %289 = vector.extract_strided_slice %287 {offsets = [0, 0], sizes = [2, 32], strides = [1, 1]} : vector<2x128xf32> to vector<2x32xf32>
    %290 = vector.extract_strided_slice %287 {offsets = [0, 32], sizes = [2, 32], strides = [1, 1]} : vector<2x128xf32> to vector<2x32xf32>
    %291 = vector.extract_strided_slice %288 {offsets = [0, 64], sizes = [2, 32], strides = [1, 1]} : vector<2x128xf32> to vector<2x32xf32>
    %292 = vector.extract_strided_slice %287 {offsets = [0, 96], sizes = [2, 32], strides = [1, 1]} : vector<2x128xf32> to vector<2x32xf32>
    %293 = arith.mulf %290, %257 : vector<2x32xf32>
    %294 = arith.mulf %289, %291 : vector<2x32xf32>
    %295 = arith.addf %293, %294 : vector<2x32xf32>
    %296 = math.tanh %295 : vector<2x32xf32>
    %297 = arith.mulf %292, %296 : vector<2x32xf32>
    %cst_43 = arith.constant dense<0.000000e+00> : vector<2x128xf32>
    %298 = tpu.matmul %297, %1, %cst_43 {dimension_numbers = #tpu.dot_dimension_numbers<[1], [0], [0], [1], [0, 0, 1, 1], [], []>} : vector<2x32xf32>, vector<32x128xf32>, vector<2x128xf32> -> vector<2x128xf32>
    %299 = vector.extract_strided_slice %280 {offsets = [0, 128], sizes = [2, 128], strides = [1, 1]} : vector<2x256xf32> to vector<2x128xf32>
    %300 = arith.addf %298, %299 : vector<2x128xf32>
    %301 = arith.addf %300, %11 : vector<2x128xf32>
    %302 = arith.negf %301 : vector<2x128xf32>
    %303 = math.exp %302 : vector<2x128xf32>
    %cst_44 = arith.constant 1.000000e+00 : f32
    %304 = vector.broadcast %cst_44 : f32 to vector<2x128xf32>
    %305 = arith.addf %304, %303 : vector<2x128xf32>
    %306 = arith.divf %304, %305 : vector<2x128xf32>
    %307 = math.tanh %301 : vector<2x128xf32>
    %308 = vector.extract_strided_slice %306 {offsets = [0, 0], sizes = [2, 32], strides = [1, 1]} : vector<2x128xf32> to vector<2x32xf32>
    %309 = vector.extract_strided_slice %306 {offsets = [0, 32], sizes = [2, 32], strides = [1, 1]} : vector<2x128xf32> to vector<2x32xf32>
    %310 = vector.extract_strided_slice %307 {offsets = [0, 64], sizes = [2, 32], strides = [1, 1]} : vector<2x128xf32> to vector<2x32xf32>
    %311 = vector.extract_strided_slice %306 {offsets = [0, 96], sizes = [2, 32], strides = [1, 1]} : vector<2x128xf32> to vector<2x32xf32>
    %312 = arith.mulf %309, %276 : vector<2x32xf32>
    %313 = arith.mulf %308, %310 : vector<2x32xf32>
    %314 = arith.addf %312, %313 : vector<2x32xf32>
    %315 = math.tanh %314 : vector<2x32xf32>
    %316 = arith.mulf %311, %315 : vector<2x32xf32>
    %317 = tpu.concatenate %50, %88, %126, %164, %202, %240, %278, %316 in 1 : vector<2x32xf32>, vector<2x32xf32>, vector<2x32xf32>, vector<2x32xf32>, vector<2x32xf32>, vector<2x32xf32>, vector<2x32xf32>, vector<2x32xf32> -> vector<2x256xf32>
    %c0_45 = arith.constant 0 : index
    %c0_46 = arith.constant 0 : index
    %318 = vector.load %arg6[%c0_45, %c0_46] : memref<256x64xf32, #tpu.memory_space<vmem>>, vector<256x64xf32>
    %cst_47 = arith.constant dense<0.000000e+00> : vector<2x64xf32>
    %319 = tpu.matmul %317, %318, %cst_47 {dimension_numbers = #tpu.dot_dimension_numbers<[1], [0], [0], [1], [0, 0, 1, 1], [], []>} : vector<2x256xf32>, vector<256x64xf32>, vector<2x64xf32> -> vector<2x64xf32>
    %c0_48 = arith.constant 0 : index
    %c0_49 = arith.constant 0 : index
    %320 = vector.load %arg7[%c0_48, %c0_49] : memref<1x64xf32, #tpu.memory_space<vmem>>, vector<1x64xf32>
    %321 = vector.shape_cast %320 : vector<1x64xf32> to vector<1x64xf32>
    %322 = vector.broadcast %321 : vector<1x64xf32> to vector<2x64xf32>
    %323 = arith.addf %319, %322 : vector<2x64xf32>
    %324 = arith.negf %323 : vector<2x64xf32>
    %325 = math.exp %324 : vector<2x64xf32>
    %cst_50 = arith.constant 1.000000e+00 : f32
    %326 = vector.broadcast %cst_50 : f32 to vector<2x64xf32>
    %327 = arith.addf %326, %325 : vector<2x64xf32>
    %328 = arith.divf %326, %327 : vector<2x64xf32>
    %c0_51 = arith.constant 0 : index
    %c0_52 = arith.constant 0 : index
    %329 = vector.load %arg8[%c0_51, %c0_52] : memref<2x64xf32, #tpu.memory_space<vmem>>, vector<2x64xf32>
    tpu.vector_store %arg8[%c0_51, %c0_52], %328 {strides = array<i32>} : memref<2x64xf32, #tpu.memory_space<vmem>>, vector<2x64xf32>,
    return
  }
}

</mosaic_0001>

<llo_original>
// kernel: arae_decoder_forward.1
$region0: #{arae_decoder_forward.1}
  #allocation0 [shape = 'u32[]', space=smem, size = 0x4, offset = 0x4, fixed_abs, tag = 'smem constant byte address 0x4 - core index']
  #allocation1 [shape = 'u32[72,128]{1,0:T(1,128)}', space=vmem, size = 0x9000, scoped, tag = 'internal scratch']
  %s0 = inlined_call_operand.vmem [shape: f32[2,32], index: 0, kind: input, shape index: {}]
  %s1 = inlined_call_operand.vmem [shape: f32[32,128], index: 1, kind: input, shape index: {}]
  %s2 = inlined_call_operand.vmem [shape: f32[64,256], index: 2, kind: input, shape index: {}]
  %s3 = inlined_call_operand.vmem [shape: f32[1,128], index: 3, kind: input, shape index: {}]
  %s4 = inlined_call_operand.vmem [shape: f32[32,128], index: 4, kind: input, shape index: {}]
  %s5 = inlined_call_operand.vmem [shape: f32[1,128], index: 5, kind: input, shape index: {}]
  %s6 = inlined_call_operand.vmem [shape: f32[256,64], index: 6, kind: input, shape index: {}]
  %s7 = inlined_call_operand.vmem [shape: f32[1,64], index: 7, kind: input, shape index: {}]
  %s8 = inlined_call_operand.vmem [shape: f32[2,64], index: 8, kind: output, shape index: {}]
  %s9 = sld [smem:[#allocation0]]
  $region42: #{arae_decoder_forward.1} parent=0
    _
  %s11 = ssub.s32 1, %s9
  %s12 = scalar_select 0, %s11, %s9
  // Predicated region
  $region2: #{arae_decoder_forward.1} parent=0 // pred_check
    _
  $region3: #{arae_decoder_forward.1} parent=0 // pred_check_branch
    %14 = sbr.rel (0) target = $region5
  $region4: #{arae_decoder_forward.1} parent=0 // pred_region
    _
  $region5: #{arae_decoder_forward.1} parent=0 // pred_fallthru
    _
  // Predicated region
  $region6: #{arae_decoder_forward.1} parent=0 // pred_check
    _
  $region7: #{arae_decoder_forward.1} parent=0 // pred_check_branch
    %16 = sbr.rel (0) target = $region9
  $region8: #{arae_decoder_forward.1} parent=0 // pred_region
    _
  $region9: #{arae_decoder_forward.1} parent=0 // pred_fallthru
    _
  // Predicated region
  $region10: #{arae_decoder_forward.1} parent=0 // pred_check
    _
  $region11: #{arae_decoder_forward.1} parent=0 // pred_check_branch
    %18 = sbr.rel (0) target = $region13
  $region12: #{arae_decoder_forward.1} parent=0 // pred_region
    _
  $region13: #{arae_decoder_forward.1} parent=0 // pred_fallthru
    _
  // Predicated region
  $region14: #{arae_decoder_forward.1} parent=0 // pred_check
    _
  $region15: #{arae_decoder_forward.1} parent=0 // pred_check_branch
    %20 = sbr.rel (0) target = $region17
  $region16: #{arae_decoder_forward.1} parent=0 // pred_region
    _
  $region17: #{arae_decoder_forward.1} parent=0 // pred_fallthru
    _
  // Predicated region
  $region18: #{arae_decoder_forward.1} parent=0 // pred_check
    _
  $region19: #{arae_decoder_forward.1} parent=0 // pred_check_branch
    %22 = sbr.rel (0) target = $region21
  $region20: #{arae_decoder_forward.1} parent=0 // pred_region
    _
  $region21: #{arae_decoder_forward.1} parent=0 // pred_fallthru
    _
  // Predicated region
  $region22: #{arae_decoder_forward.1} parent=0 // pred_check
    _
  $region23: #{arae_decoder_forward.1} parent=0 // pred_check_branch
    %24 = sbr.rel (0) target = $region25
  $region24: #{arae_decoder_forward.1} parent=0 // pred_region
    _
  $region25: #{arae_decoder_forward.1} parent=0 // pred_fallthru
    _
  // Predicated region
  $region26: #{arae_decoder_forward.1} parent=0 // pred_check
    _
  $region27: #{arae_decoder_forward.1} parent=0 // pred_check_branch
    %26 = sbr.rel (0) target = $region29
  $region28: #{arae_decoder_forward.1} parent=0 // pred_region
    _
  $region29: #{arae_decoder_forward.1} parent=0 // pred_fallthru
    _
  // Predicated region
  $region30: #{arae_decoder_forward.1} parent=0 // pred_check
    _
  $region31: #{arae_decoder_forward.1} parent=0 // pred_check_branch
    %28 = sbr.rel (0) target = $region33
  $region32: #{arae_decoder_forward.1} parent=0 // pred_region
    _
  $region33: #{arae_decoder_forward.1} parent=0 // pred_fallthru
    _
  %v29 = vld [vmem:[%s2] sm:$0xff]
  %v30 = vld [vmem:[%s2 + $0x8] sm:$0xff]
  %v31 = vld [vmem:[%s2 + $0x10] sm:$0xff]
  %v32 = vld [vmem:[%s2 + $0x18] sm:$0xff]
  %v33 = vld [vmem:[%s2 + $0x20] sm:$0xff]
  %v34 = vld [vmem:[%s2 + $0x28] sm:$0xff]
  %v35 = vld [vmem:[%s2 + $0x30] sm:$0xff]
  %v36 = vld [vmem:[%s2 + $0x38] sm:$0xff]
  %v37 = vld [vmem:[%s2 + $0x40] sm:$0xff]
  %v38 = vld [vmem:[%s2 + $0x48] sm:$0xff]
  %v39 = vld [vmem:[%s2 + $0x50] sm:$0xff]
  %v40 = vld [vmem:[%s2 + $0x58] sm:$0xff]
  %v41 = vld [vmem:[%s2 + $0x60] sm:$0xff]
  %v42 = vld [vmem:[%s2 + $0x68] sm:$0xff]
  %v43 = vld [vmem:[%s2 + $0x70] sm:$0xff]
  %v44 = vld [vmem:[%s2 + $0x78] sm:$0xff]
  %v45 = vld [vmem:[%s4] sm:$0xff]
  %v46 = vld [vmem:[%s4 + $0x8] sm:$0xff]
  %v47 = vld [vmem:[%s4 + $0x10] sm:$0xff]
  %v48 = vld [vmem:[%s4 + $0x18] sm:$0xff]
  %v49 = vld [vmem:[%s0] sm:$0x3]
  %v50 = vld [vmem:[%s1] sm:$0xff]
  %v51 = vld [vmem:[%s1 + $0x8] sm:$0xff]
  %v52 = vld [vmem:[%s1 + $0x10] sm:$0xff]
  %v53 = vld [vmem:[%s1 + $0x18] sm:$0xff]
  %v54 = vld [vmem:[%s3] sm:$0x1]
  %v56 = vperm.slane %v54, 0
  %vm58 = vcmask 261120
  %v60 = vsel %vm58, %v49, 0
  %62 = vmatpush.msra.mxu0 0.0
  %63 = vmatpush.msra.mxu0 0.0
  %64 = vmatpush.msra.mxu0 0.0
  %65 = vmatpush.msra.mxu0 0.0
  %66 = vmatpush.msra.mxu0 0.0
  %67 = vmatpush.msra.mxu0 0.0
  %68 = vmatpush.msra.mxu0 0.0
  %69 = vmatpush.msra.mxu0 0.0
  %70 = vmatpush.msra.mxu0 0.0
  %71 = vmatpush.msra.mxu0 0.0
  %72 = vmatpush.msra.mxu0 0.0
  %73 = vmatpush.msra.mxu0 0.0
  %74 = vmatpush.msra.mxu0 %v53
  %75 = vmatpush.msra.mxu0 %v52
  %76 = vmatpush.msra.mxu0 %v51
  %77 = vmatpush.msra.mxu0 %v50
  %78 = vmatmul.f32.gmra.mxu0 %v60
  %v79 = vpop.f32.mrf.mxu0
  %v80 = vadd.f32 %v56, %v79
  %81 = vdwg.mxu0
  %v82 = vld [vmem:[%s5] sm:$0x1]
  %v84 = vperm.slane %v82, 0
  %vm86 = vcmask 523264
  %v88 = vsel %vm86, 0.0, 0
  %90 = vmatpush.msra.mxu0 0.0
  %91 = vmatpush.msra.mxu0 0.0
  %92 = vmatpush.msra.mxu0 0.0
  %93 = vmatpush.msra.mxu0 0.0
  %94 = vmatpush.msra.mxu0 0.0
  %95 = vmatpush.msra.mxu0 0.0
  %96 = vmatpush.msra.mxu0 0.0
  %97 = vmatpush.msra.mxu0 0.0
  %98 = vmatpush.msra.mxu0 %v43
  %99 = vmatpush.msra.mxu0 %v41
  %100 = vmatpush.msra.mxu0 %v39
  %101 = vmatpush.msra.mxu0 %v37
  %102 = vmatpush.msra.mxu0 %v35
  %103 = vmatpush.msra.mxu0 %v33
  %104 = vmatpush.msra.mxu0 %v31
  %105 = vmatpush.msra.mxu0 %v29
  %106 = vmatmul.f32.gmra.mxu0 %v88
  %v107 = vpop.f32.mrf.mxu0
  %v108 = vadd.f32 0.0, %v107
  %109 = vdwg.mxu0
  %110 = vmatpush.msra.mxu0 0.0
  %111 = vmatpush.msra.mxu0 0.0
  %112 = vmatpush.msra.mxu0 0.0
  %113 = vmatpush.msra.mxu0 0.0
  %114 = vmatpush.msra.mxu0 0.0
  %115 = vmatpush.msra.mxu0 0.0
  %116 = vmatpush.msra.mxu0 0.0
  %117 = vmatpush.msra.mxu0 0.0
  %118 = vmatpush.msra.mxu0 %v44
  %119 = vmatpush.msra.mxu0 %v42
  %120 = vmatpush.msra.mxu0 %v40
  %121 = vmatpush.msra.mxu0 %v38
  %122 = vmatpush.msra.mxu0 %v36
  %123 = vmatpush.msra.mxu0 %v34
  %124 = vmatpush.msra.mxu0 %v32
  %125 = vmatpush.msra.mxu0 %v30
  %126 = vmatmul.f32.gmra.mxu0 %v88
  %v127 = vpop.f32.mrf.mxu0
  %v128 = vadd.f32 0.0, %v127
  %129 = vdwg.mxu0
  %v130 = vadd.f32 %v80, %v108
  %v131 = vxor.u32 %v130, 2147483648
  %v132 = vmul.f32 %v131, 1.442695
  %v133 = vpow.pop %v132
  %v134 = vadd.f32 %v133, 1.0
  %v135 = vrcp.pop %v134
  %v136 = vmul.f32 %v134, %v135
  %v137 = vsub.f32 1.0, %v136
  %v138 = vmul.f32 %v135, %v137
  %v139 = vadd.f32 %v135, %v138
  %vm140 = vweird.f32 %v134
  %vm141 = vweird.f32 %v135
  %vm142 = vmor %vm140, %vm141
  %v143 = vsel %vm142, %v135, %v139
  %v144 = vand.u32 2147483647, %v134
  %vm145 = vcmp.eq.f32.partialorder %v144, 8.507059e+37
  %v146 = vand.u32 %v134, 2147483648
  %v147 = vor.u32 1.1754944e-38, %v146
  %v148 = vsel %vm145, %v147, %v143
  %v149 = vmul.f32 1.0, %v148
  %v150 = vtanh.pop %v130
  %v151 = vmul.f32 %v149, 0.0
  %153 = vrot.lane.b32.xlu0 %v150, 64
  %v154 = vpop.permute.xlu0 %153
  %v156 = vmul.f32 %v149, %v154
  %158 = vrot.lane.b32.xlu0 %v156, 32
  %v159 = vpop.permute.xlu0 %158
  %v161 = vadd.f32 %v151, %v159
  %v162 = vtanh.pop %v161
  %164 = vrot.lane.b32.xlu0 %v162, 64
  %v165 = vpop.permute.xlu0 %164
  %v167 = vmul.f32 %v149, %v165
  %169 = vrot.lane.b32.xlu0 %v167, 32
  %v170 = vpop.permute.xlu0 %169
  %v171 = vsel %vm58, %v170, 0
  %173 = vmatpush.msra.mxu0 0.0
  %174 = vmatpush.msra.mxu0 0.0
  %175 = vmatpush.msra.mxu0 0.0
  %176 = vmatpush.msra.mxu0 0.0
  %177 = vmatpush.msra.mxu0 0.0
  %178 = vmatpush.msra.mxu0 0.0
  %179 = vmatpush.msra.mxu0 0.0
  %180 = vmatpush.msra.mxu0 0.0
  %181 = vmatpush.msra.mxu0 0.0
  %182 = vmatpush.msra.mxu0 0.0
  %183 = vmatpush.msra.mxu0 0.0
  %184 = vmatpush.msra.mxu0 0.0
  %185 = vmatpush.msra.mxu0 %v48
  %186 = vmatpush.msra.mxu0 %v47
  %187 = vmatpush.msra.mxu0 %v46
  %188 = vmatpush.msra.mxu0 %v45
  %189 = vmatmul.f32.gmra.mxu0 %v171
  %v190 = vpop.f32.mrf.mxu0
  %v191 = vadd.f32 %v128, %v190
  %192 = vdwg.mxu0
  %v193 = vadd.f32 %v191, %v84
  %v194 = vxor.u32 %v193, 2147483648
  %v195 = vmul.f32 %v194, 1.442695
  %v196 = vpow.pop %v195
  %v197 = vadd.f32 %v196, 1.0
  %v198 = vrcp.pop %v197
  %v199 = vmul.f32 %v197, %v198
  %v200 = vsub.f32 1.0, %v199
  %v201 = vmul.f32 %v198, %v200
  %v202 = vadd.f32 %v198, %v201
  %vm203 = vweird.f32 %v197
  %vm204 = vweird.f32 %v198
  %vm205 = vmor %vm203, %vm204
  %v206 = vsel %vm205, %v198, %v202
  %v207 = vand.u32 2147483647, %v197
  %vm208 = vcmp.eq.f32.partialorder %v207, 8.507059e+37
  %v209 = vand.u32 %v197, 2147483648
  %v210 = vor.u32 1.1754944e-38, %v209
  %v211 = vsel %vm208, %v210, %v206
  %v212 = vmul.f32 1.0, %v211
  %v213 = vtanh.pop %v193
  %v214 = vmul.f32 %v212, 0.0
  %216 = vrot.lane.b32.xlu0 %v213, 64
  %v217 = vpop.permute.xlu0 %216
  %v219 = vmul.f32 %v212, %v217
  %221 = vrot.lane.b32.xlu0 %v219, 32
  %v222 = vpop.permute.xlu0 %221
  %v224 = vadd.f32 %v214, %v222
  %v225 = vtanh.pop %v224
  %227 = vrot.lane.b32.xlu0 %v225, 64
  %v228 = vpop.permute.xlu0 %227
  %v230 = vmul.f32 %v212, %v228
  %233 = vrot.lane.b32.xlu0 %v230, 64
  %v234 = vpop.permute.xlu0 %233
  %v236 = vsel %vm58, %v170, %v234
  %v238 = vsel %vm86, %v236, 0
  %240 = vmatpush.msra.mxu0 0.0
  %241 = vmatpush.msra.mxu0 0.0
  %242 = vmatpush.msra.mxu0 0.0
  %243 = vmatpush.msra.mxu0 0.0
  %244 = vmatpush.msra.mxu0 0.0
  %245 = vmatpush.msra.mxu0 0.0
  %246 = vmatpush.msra.mxu0 0.0
  %247 = vmatpush.msra.mxu0 0.0
  %248 = vmatpush.msra.mxu0 %v43
  %249 = vmatpush.msra.mxu0 %v41
  %250 = vmatpush.msra.mxu0 %v39
  %251 = vmatpush.msra.mxu0 %v37
  %252 = vmatpush.msra.mxu0 %v35
  %253 = vmatpush.msra.mxu0 %v33
  %254 = vmatpush.msra.mxu0 %v31
  %255 = vmatpush.msra.mxu0 %v29
  %256 = vmatmul.f32.gmra.mxu0 %v238
  %v257 = vpop.f32.mrf.mxu0
  %v258 = vadd.f32 0.0, %v257
  %259 = vdwg.mxu0
  %260 = vmatpush.msra.mxu0 0.0
  %261 = vmatpush.msra.mxu0 0.0
  %262 = vmatpush.msra.mxu0 0.0
  %263 = vmatpush.msra.mxu0 0.0
  %264 = vmatpush.msra.mxu0 0.0
  %265 = vmatpush.msra.mxu0 0.0
  %266 = vmatpush.msra.mxu0 0.0
  %267 = vmatpush.msra.mxu0 0.0
  %268 = vmatpush.msra.mxu0 %v44
  %269 = vmatpush.msra.mxu0 %v42
  %270 = vmatpush.msra.mxu0 %v40
  %271 = vmatpush.msra.mxu0 %v38
  %272 = vmatpush.msra.mxu0 %v36
  %273 = vmatpush.msra.mxu0 %v34
  %274 = vmatpush.msra.mxu0 %v32
  %275 = vmatpush.msra.mxu0 %v30
  %276 = vmatmul.f32.gmra.mxu0 %v238
  %v277 = vpop.f32.mrf.mxu0
  %v278 = vadd.f32 0.0, %v277
  %279 = vdwg.mxu0
  %v280 = vadd.f32 %v80, %v258
  %v281 = vxor.u32 %v280, 2147483648
  %v282 = vmul.f32 %v281, 1.442695
  %v283 = vpow.pop %v282
  %v284 = vadd.f32 %v283, 1.0
  %v285 = vrcp.pop %v284
  %v286 = vmul.f32 %v284, %v285
  %v287 = vsub.f32 1.0, %v286
  %v288 = vmul.f32 %v285, %v287
  %v289 = vadd.f32 %v285, %v288
  %vm290 = vweird.f32 %v284
  %vm291 = vweird.f32 %v285
  %vm292 = vmor %vm290, %vm291
  %v293 = vsel %vm292, %v285, %v289
  %v294 = vand.u32 2147483647, %v284
  %vm295 = vcmp.eq.f32.partialorder %v294, 8.507059e+37
  %v296 = vand.u32 %v284, 2147483648
  %v297 = vor.u32 1.1754944e-38, %v296
  %v298 = vsel %vm295, %v297, %v293
  %v299 = vmul.f32 1.0, %v298
  %v300 = vtanh.pop %v280
  %v301 = vmul.f32 %v299, %v161
  %303 = vrot.lane.b32.xlu0 %v300, 64
  %v304 = vpop.permute.xlu0 %303
  %v306 = vmul.f32 %v299, %v304
  %308 = vrot.lane.b32.xlu0 %v306, 32
  %v309 = vpop.permute.xlu0 %308
  %v311 = vadd.f32 %v301, %v309
  %v312 = vtanh.pop %v311
  %314 = vrot.lane.b32.xlu0 %v312, 64
  %v315 = vpop.permute.xlu0 %314
  %v317 = vmul.f32 %v299, %v315
  %319 = vrot.lane.b32.xlu0 %v317, 32
  %v320 = vpop.permute.xlu0 %319
  %v321 = vsel %vm58, %v320, 0
  %323 = vmatpush.msra.mxu0 0.0
  %324 = vmatpush.msra.mxu0 0.0
  %325 = vmatpush.msra.mxu0 0.0
  %326 = vmatpush.msra.mxu0 0.0
  %327 = vmatpush.msra.mxu0 0.0
  %328 = vmatpush.msra.mxu0 0.0
  %329 = vmatpush.msra.mxu0 0.0
  %330 = vmatpush.msra.mxu0 0.0
  %331 = vmatpush.msra.mxu0 0.0
  %332 = vmatpush.msra.mxu0 0.0
  %333 = vmatpush.msra.mxu0 0.0
  %334 = vmatpush.msra.mxu0 0.0
  %335 = vmatpush.msra.mxu0 %v48
  %336 = vmatpush.msra.mxu0 %v47
  %337 = vmatpush.msra.mxu0 %v46
  %338 = vmatpush.msra.mxu0 %v45
  %339 = vmatmul.f32.gmra.mxu0 %v321
  %v340 = vpop.f32.mrf.mxu0
  %v341 = vadd.f32 %v278, %v340
  %342 = vdwg.mxu0
  %v343 = vadd.f32 %v341, %v84
  %v344 = vxor.u32 %v343, 2147483648
  %v345 = vmul.f32 %v344, 1.442695
  %v346 = vpow.pop %v345
  %v347 = vadd.f32 %v346, 1.0
  %v348 = vrcp.pop %v347
  %v349 = vmul.f32 %v347, %v348
  %v350 = vsub.f32 1.0, %v349
  %v351 = vmul.f32 %v348, %v350
  %v352 = vadd.f32 %v348, %v351
  %vm353 = vweird.f32 %v347
  %vm354 = vweird.f32 %v348
  %vm355 = vmor %vm353, %vm354
  %v356 = vsel %vm355, %v348, %v352
  %v357 = vand.u32 2147483647, %v347
  %vm358 = vcmp.eq.f32.partialorder %v357, 8.507059e+37
  %v359 = vand.u32 %v347, 2147483648
  %v360 = vor.u32 1.1754944e-38, %v359
  %v361 = vsel %vm358, %v360, %v356
  %v362 = vmul.f32 1.0, %v361
  %v363 = vtanh.pop %v343
  %v364 = vmul.f32 %v362, %v224
  %366 = vrot.lane.b32.xlu0 %v363, 64
  %v367 = vpop.permute.xlu0 %366
  %v369 = vmul.f32 %v362, %v367
  %371 = vrot.lane.b32.xlu0 %v369, 32
  %v372 = vpop.permute.xlu0 %371
  %v374 = vadd.f32 %v364, %v372
  %v375 = vtanh.pop %v374
  %377 = vrot.lane.b32.xlu0 %v375, 64
  %v378 = vpop.permute.xlu0 %377
  %v380 = vmul.f32 %v362, %v378
  %383 = vrot.lane.b32.xlu0 %v380, 64
  %v384 = vpop.permute.xlu0 %383
  %v386 = vsel %vm58, %v320, %v384
  %v388 = vsel %vm86, %v386, 0
  %390 = vmatpush.msra.mxu0 0.0
  %391 = vmatpush.msra.mxu0 0.0
  %392 = vmatpush.msra.mxu0 0.0
  %393 = vmatpush.msra.mxu0 0.0
  %394 = vmatpush.msra.mxu0 0.0
  %395 = vmatpush.msra.mxu0 0.0
  %396 = vmatpush.msra.mxu0 0.0
  %397 = vmatpush.msra.mxu0 0.0
  %398 = vmatpush.msra.mxu0 %v43
  %399 = vmatpush.msra.mxu0 %v41
  %400 = vmatpush.msra.mxu0 %v39
  %401 = vmatpush.msra.mxu0 %v37
  %402 = vmatpush.msra.mxu0 %v35
  %403 = vmatpush.msra.mxu0 %v33
  %404 = vmatpush.msra.mxu0 %v31
  %405 = vmatpush.msra.mxu0 %v29
  %406 = vmatmul.f32.gmra.mxu0 %v388
  %v407 = vpop.f32.mrf.mxu0
  %v408 = vadd.f32 0.0, %v407
  %409 = vdwg.mxu0
  %410 = vmatpush.msra.mxu0 0.0
  %411 = vmatpush.msra.mxu0 0.0
  %412 = vmatpush.msra.mxu0 0.0
  %413 = vmatpush.msra.mxu0 0.0
  %414 = vmatpush.msra.mxu0 0.0
  %415 = vmatpush.msra.mxu0 0.0
  %416 = vmatpush.msra.mxu0 0.0
  %417 = vmatpush.msra.mxu0 0.0
  %418 = vmatpush.msra.mxu0 %v44
  %419 = vmatpush.msra.mxu0 %v42
  %420 = vmatpush.msra.mxu0 %v40
  %421 = vmatpush.msra.mxu0 %v38
  %422 = vmatpush.msra.mxu0 %v36
  %423 = vmatpush.msra.mxu0 %v34
  %424 = vmatpush.msra.mxu0 %v32
  %425 = vmatpush.msra.mxu0 %v30
  %426 = vmatmul.f32.gmra.mxu0 %v388
  %v427 = vpop.f32.mrf.mxu0
  %v428 = vadd.f32 0.0, %v427
  %429 = vdwg.mxu0
  %v430 = vadd.f32 %v80, %v408
  %v431 = vxor.u32 %v430, 2147483648
  %v432 = vmul.f32 %v431, 1.442695
  %v433 = vpow.pop %v432
  %v434 = vadd.f32 %v433, 1.0
  %v435 = vrcp.pop %v434
  %v436 = vmul.f32 %v434, %v435
  %v437 = vsub.f32 1.0, %v436
  %v438 = vmul.f32 %v435, %v437
  %v439 = vadd.f32 %v435, %v438
  %vm440 = vweird.f32 %v434
  %vm441 = vweird.f32 %v435
  %vm442 = vmor %vm440, %vm441
  %v443 = vsel %vm442, %v435, %v439
  %v444 = vand.u32 2147483647, %v434
  %vm445 = vcmp.eq.f32.partialorder %v444, 8.507059e+37
  %v446 = vand.u32 %v434, 2147483648
  %v447 = vor.u32 1.1754944e-38, %v446
  %v448 = vsel %vm445, %v447, %v443
  %v449 = vmul.f32 1.0, %v448
  %v450 = vtanh.pop %v430
  %v451 = vmul.f32 %v449, %v311
  %453 = vrot.lane.b32.xlu0 %v450, 64
  %v454 = vpop.permute.xlu0 %453
  %v456 = vmul.f32 %v449, %v454
  %458 = vrot.lane.b32.xlu0 %v456, 32
  %v459 = vpop.permute.xlu0 %458
  %v461 = vadd.f32 %v451, %v459
  %v462 = vtanh.pop %v461
  %464 = vrot.lane.b32.xlu0 %v462, 64
  %v465 = vpop.permute.xlu0 %464
  %v467 = vmul.f32 %v449, %v465
  %469 = vrot.lane.b32.xlu0 %v467, 32
  %v470 = vpop.permute.xlu0 %469
  %v471 = vsel %vm58, %v470, 0
  %473 = vmatpush.msra.mxu0 0.0
  %474 = vmatpush.msra.mxu0 0.0
  %475 = vmatpush.msra.mxu0 0.0
  %476 = vmatpush.msra.mxu0 0.0
  %477 = vmatpush.msra.mxu0 0.0
  %478 = vmatpush.msra.mxu0 0.0
  %479 = vmatpush.msra.mxu0 0.0
  %480 = vmatpush.msra.mxu0 0.0
  %481 = vmatpush.msra.mxu0 0.0
  %482 = vmatpush.msra.mxu0 0.0
  %483 = vmatpush.msra.mxu0 0.0
  %484 = vmatpush.msra.mxu0 0.0
  %485 = vmatpush.msra.mxu0 %v48
  %486 = vmatpush.msra.mxu0 %v47
  %487 = vmatpush.msra.mxu0 %v46
  %488 = vmatpush.msra.mxu0 %v45
  %489 = vmatmul.f32.gmra.mxu0 %v471
  %v490 = vpop.f32.mrf.mxu0
  %v491 = vadd.f32 %v428, %v490
  %492 = vdwg.mxu0
  %v493 = vadd.f32 %v491, %v84
  %v494 = vxor.u32 %v493, 2147483648
  %v495 = vmul.f32 %v494, 1.442695
  %v496 = vpow.pop %v495
  %v497 = vadd.f32 %v496, 1.0
  %v498 = vrcp.pop %v497
  %v499 = vmul.f32 %v497, %v498
  %v500 = vsub.f32 1.0, %v499
  %v501 = vmul.f32 %v498, %v500
  %v502 = vadd.f32 %v498, %v501
  %vm503 = vweird.f32 %v497
  %vm504 = vweird.f32 %v498
  %vm505 = vmor %vm503, %vm504
  %v506 = vsel %vm505, %v498, %v502
  %v507 = vand.u32 2147483647, %v497
  %vm508 = vcmp.eq.f32.partialorder %v507, 8.507059e+37
  %v509 = vand.u32 %v497, 2147483648
  %v510 = vor.u32 1.1754944e-38, %v509
  %v511 = vsel %vm508, %v510, %v506
  %v512 = vmul.f32 1.0, %v511
  %v513 = vtanh.pop %v493
  %v514 = vmul.f32 %v512, %v374
  %516 = vrot.lane.b32.xlu0 %v513, 64
  %v517 = vpop.permute.xlu0 %516
  %v519 = vmul.f32 %v512, %v517
  %521 = vrot.lane.b32.xlu0 %v519, 32
  %v522 = vpop.permute.xlu0 %521
  %v524 = vadd.f32 %v514, %v522
  %v525 = vtanh.pop %v524
  %527 = vrot.lane.b32.xlu0 %v525, 64
  %v528 = vpop.permute.xlu0 %527
  %v530 = vmul.f32 %v512, %v528
  %533 = vrot.lane.b32.xlu0 %v530, 64
  %v534 = vpop.permute.xlu0 %533
  %v536 = vsel %vm58, %v470, %v534
  %v538 = vsel %vm86, %v536, 0
  %540 = vmatpush.msra.mxu0 0.0
  %541 = vmatpush.msra.mxu0 0.0
  %542 = vmatpush.msra.mxu0 0.0
  %543 = vmatpush.msra.mxu0 0.0
  %544 = vmatpush.msra.mxu0 0.0
  %545 = vmatpush.msra.mxu0 0.0
  %546 = vmatpush.msra.mxu0 0.0
  %547 = vmatpush.msra.mxu0 0.0
  %548 = vmatpush.msra.mxu0 %v43
  %549 = vmatpush.msra.mxu0 %v41
  %550 = vmatpush.msra.mxu0 %v39
  %551 = vmatpush.msra.mxu0 %v37
  %552 = vmatpush.msra.mxu0 %v35
  %553 = vmatpush.msra.mxu0 %v33
  %554 = vmatpush.msra.mxu0 %v31
  %555 = vmatpush.msra.mxu0 %v29
  %556 = vmatmul.f32.gmra.mxu0 %v538
  %v557 = vpop.f32.mrf.mxu0
  %v558 = vadd.f32 0.0, %v557
  %559 = vdwg.mxu0
  %560 = vmatpush.msra.mxu0 0.0
  %561 = vmatpush.msra.mxu0 0.0
  %562 = vmatpush.msra.mxu0 0.0
  %563 = vmatpush.msra.mxu0 0.0
  %564 = vmatpush.msra.mxu0 0.0
  %565 = vmatpush.msra.mxu0 0.0
  %566 = vmatpush.msra.mxu0 0.0
  %567 = vmatpush.msra.mxu0 0.0
  %568 = vmatpush.msra.mxu0 %v44
  %569 = vmatpush.msra.mxu0 %v42
  %570 = vmatpush.msra.mxu0 %v40
  %571 = vmatpush.msra.mxu0 %v38
  %572 = vmatpush.msra.mxu0 %v36
  %573 = vmatpush.msra.mxu0 %v34
  %574 = vmatpush.msra.mxu0 %v32
  %575 = vmatpush.msra.mxu0 %v30
  %576 = vmatmul.f32.gmra.mxu0 %v538
  %v577 = vpop.f32.mrf.mxu0
  %v578 = vadd.f32 0.0, %v577
  %579 = vdwg.mxu0
  %v580 = vadd.f32 %v80, %v558
  %v581 = vxor.u32 %v580, 2147483648
  %v582 = vmul.f32 %v581, 1.442695
  %v583 = vpow.pop %v582
  %v584 = vadd.f32 %v583, 1.0
  %v585 = vrcp.pop %v584
  %v586 = vmul.f32 %v584, %v585
  %v587 = vsub.f32 1.0, %v586
  %v588 = vmul.f32 %v585, %v587
  %v589 = vadd.f32 %v585, %v588
  %vm590 = vweird.f32 %v584
  %vm591 = vweird.f32 %v585
  %vm592 = vmor %vm590, %vm591
  %v593 = vsel %vm592, %v585, %v589
  %v594 = vand.u32 2147483647, %v584
  %vm595 = vcmp.eq.f32.partialorder %v594, 8.507059e+37
  %v596 = vand.u32 %v584, 2147483648
  %v597 = vor.u32 1.1754944e-38, %v596
  %v598 = vsel %vm595, %v597, %v593
  %v599 = vmul.f32 1.0, %v598
  %v600 = vtanh.pop %v580
  %v601 = vmul.f32 %v599, %v461
  %603 = vrot.lane.b32.xlu0 %v600, 64
  %v604 = vpop.permute.xlu0 %603
  %v606 = vmul.f32 %v599, %v604
  %608 = vrot.lane.b32.xlu0 %v606, 32
  %v609 = vpop.permute.xlu0 %608
  %v611 = vadd.f32 %v601, %v609
  %v612 = vtanh.pop %v611
  %614 = vrot.lane.b32.xlu0 %v612, 64
  %v615 = vpop.permute.xlu0 %614
  %v617 = vmul.f32 %v599, %v615
  %619 = vrot.lane.b32.xlu0 %v617, 32
  %v620 = vpop.permute.xlu0 %619
  %v621 = vsel %vm58, %v620, 0
  %623 = vmatpush.msra.mxu0 0.0
  %624 = vmatpush.msra.mxu0 0.0
  %625 = vmatpush.msra.mxu0 0.0
  %626 = vmatpush.msra.mxu0 0.0
  %627 = vmatpush.msra.mxu0 0.0
  %628 = vmatpush.msra.mxu0 0.0
  %629 = vmatpush.msra.mxu0 0.0
  %630 = vmatpush.msra.mxu0 0.0
  %631 = vmatpush.msra.mxu0 0.0
  %632 = vmatpush.msra.mxu0 0.0
  %633 = vmatpush.msra.mxu0 0.0
  %634 = vmatpush.msra.mxu0 0.0
  %635 = vmatpush.msra.mxu0 %v48
  %636 = vmatpush.msra.mxu0 %v47
  %637 = vmatpush.msra.mxu0 %v46
  %638 = vmatpush.msra.mxu0 %v45
  %639 = vmatmul.f32.gmra.mxu0 %v621
  %v640 = vpop.f32.mrf.mxu0
  %v641 = vadd.f32 %v578, %v640
  %642 = vdwg.mxu0
  %v643 = vadd.f32 %v641, %v84
  %v644 = vxor.u32 %v643, 2147483648
  %v645 = vmul.f32 %v644, 1.442695
  %v646 = vpow.pop %v645
  %v647 = vadd.f32 %v646, 1.0
  %v648 = vrcp.pop %v647
  %v649 = vmul.f32 %v647, %v648
  %v650 = vsub.f32 1.0, %v649
  %v651 = vmul.f32 %v648, %v650
  %v652 = vadd.f32 %v648, %v651
  %vm653 = vweird.f32 %v647
  %vm654 = vweird.f32 %v648
  %vm655 = vmor %vm653, %vm654
  %v656 = vsel %vm655, %v648, %v652
  %v657 = vand.u32 2147483647, %v647
  %vm658 = vcmp.eq.f32.partialorder %v657, 8.507059e+37
  %v659 = vand.u32 %v647, 2147483648
  %v660 = vor.u32 1.1754944e-38, %v659
  %v661 = vsel %vm658, %v660, %v656
  %v662 = vmul.f32 1.0, %v661
  %v663 = vtanh.pop %v643
  %v664 = vmul.f32 %v662, %v524
  %666 = vrot.lane.b32.xlu0 %v663, 64
  %v667 = vpop.permute.xlu0 %666
  %v669 = vmul.f32 %v662, %v667
  %671 = vrot.lane.b32.xlu0 %v669, 32
  %v672 = vpop.permute.xlu0 %671
  %v674 = vadd.f32 %v664, %v672
  %v675 = vtanh.pop %v674
  %677 = vrot.lane.b32.xlu0 %v675, 64
  %v678 = vpop.permute.xlu0 %677
  %v680 = vmul.f32 %v662, %v678
  %683 = vrot.lane.b32.xlu0 %v680, 64
  %v684 = vpop.permute.xlu0 %683
  %v686 = vsel %vm58, %v620, %v684
  %v688 = vsel %vm86, %v686, 0
  %690 = vmatpush.msra.mxu0 0.0
  %691 = vmatpush.msra.mxu0 0.0
  %692 = vmatpush.msra.mxu0 0.0
  %693 = vmatpush.msra.mxu0 0.0
  %694 = vmatpush.msra.mxu0 0.0
  %695 = vmatpush.msra.mxu0 0.0
  %696 = vmatpush.msra.mxu0 0.0
  %697 = vmatpush.msra.mxu0 0.0
  %698 = vmatpush.msra.mxu0 %v43
  %699 = vmatpush.msra.mxu0 %v41
  %700 = vmatpush.msra.mxu0 %v39
  %701 = vmatpush.msra.mxu0 %v37
  %702 = vmatpush.msra.mxu0 %v35
  %703 = vmatpush.msra.mxu0 %v33
  %704 = vmatpush.msra.mxu0 %v31
  %705 = vmatpush.msra.mxu0 %v29
  %706 = vmatmul.f32.gmra.mxu0 %v688
  %v707 = vpop.f32.mrf.mxu0
  %v708 = vadd.f32 0.0, %v707
  %709 = vdwg.mxu0
  %710 = vmatpush.msra.mxu0 0.0
  %711 = vmatpush.msra.mxu0 0.0
  %712 = vmatpush.msra.mxu0 0.0
  %713 = vmatpush.msra.mxu0 0.0
  %714 = vmatpush.msra.mxu0 0.0
  %715 = vmatpush.msra.mxu0 0.0
  %716 = vmatpush.msra.mxu0 0.0
  %717 = vmatpush.msra.mxu0 0.0
  %718 = vmatpush.msra.mxu0 %v44
  %719 = vmatpush.msra.mxu0 %v42
  %720 = vmatpush.msra.mxu0 %v40
  %721 = vmatpush.msra.mxu0 %v38
  %722 = vmatpush.msra.mxu0 %v36
  %723 = vmatpush.msra.mxu0 %v34
  %724 = vmatpush.msra.mxu0 %v32
  %725 = vmatpush.msra.mxu0 %v30
  %726 = vmatmul.f32.gmra.mxu0 %v688
  %v727 = vpop.f32.mrf.mxu0
  %v728 = vadd.f32 0.0, %v727
  %729 = vdwg.mxu0
  %v730 = vadd.f32 %v80, %v708
  %v731 = vxor.u32 %v730, 2147483648
  %v732 = vmul.f32 %v731, 1.442695
  %v733 = vpow.pop %v732
  %v734 = vadd.f32 %v733, 1.0
  %v735 = vrcp.pop %v734
  %v736 = vmul.f32 %v734, %v735
  %v737 = vsub.f32 1.0, %v736
  %v738 = vmul.f32 %v735, %v737
  %v739 = vadd.f32 %v735, %v738
  %vm740 = vweird.f32 %v734
  %vm741 = vweird.f32 %v735
  %vm742 = vmor %vm740, %vm741
  %v743 = vsel %vm742, %v735, %v739
  %v744 = vand.u32 2147483647, %v734
  %vm745 = vcmp.eq.f32.partialorder %v744, 8.507059e+37
  %v746 = vand.u32 %v734, 2147483648
  %v747 = vor.u32 1.1754944e-38, %v746
  %v748 = vsel %vm745, %v747, %v743
  %v749 = vmul.f32 1.0, %v748
  %v750 = vtanh.pop %v730
  %v751 = vmul.f32 %v749, %v611
  %753 = vrot.lane.b32.xlu0 %v750, 64
  %v754 = vpop.permute.xlu0 %753
  %v756 = vmul.f32 %v749, %v754
  %758 = vrot.lane.b32.xlu0 %v756, 32
  %v759 = vpop.permute.xlu0 %758
  %v761 = vadd.f32 %v751, %v759
  %v762 = vtanh.pop %v761
  %764 = vrot.lane.b32.xlu0 %v762, 64
  %v765 = vpop.permute.xlu0 %764
  %v767 = vmul.f32 %v749, %v765
  %769 = vrot.lane.b32.xlu0 %v767, 32
  %v770 = vpop.permute.xlu0 %769
  %v771 = vsel %vm58, %v770, 0
  %773 = vmatpush.msra.mxu0 0.0
  %774 = vmatpush.msra.mxu0 0.0
  %775 = vmatpush.msra.mxu0 0.0
  %776 = vmatpush.msra.mxu0 0.0
  %777 = vmatpush.msra.mxu0 0.0
  %778 = vmatpush.msra.mxu0 0.0
  %779 = vmatpush.msra.mxu0 0.0
  %780 = vmatpush.msra.mxu0 0.0
  %781 = vmatpush.msra.mxu0 0.0
  %782 = vmatpush.msra.mxu0 0.0
  %783 = vmatpush.msra.mxu0 0.0
  %784 = vmatpush.msra.mxu0 0.0
  %785 = vmatpush.msra.mxu0 %v48
  %786 = vmatpush.msra.mxu0 %v47
  %787 = vmatpush.msra.mxu0 %v46
  %788 = vmatpush.msra.mxu0 %v45
  %789 = vmatmul.f32.gmra.mxu0 %v771
  %v790 = vpop.f32.mrf.mxu0
  %v791 = vadd.f32 %v728, %v790
  %792 = vdwg.mxu0
  %v793 = vadd.f32 %v791, %v84
  %v794 = vxor.u32 %v793, 2147483648
  %v795 = vmul.f32 %v794, 1.442695
  %v796 = vpow.pop %v795
  %v797 = vadd.f32 %v796, 1.0
  %v798 = vrcp.pop %v797
  %v799 = vmul.f32 %v797, %v798
  %v800 = vsub.f32 1.0, %v799
  %v801 = vmul.f32 %v798, %v800
  %v802 = vadd.f32 %v798, %v801
  %vm803 = vweird.f32 %v797
  %vm804 = vweird.f32 %v798
  %vm805 = vmor %vm803, %vm804
  %v806 = vsel %vm805, %v798, %v802
  %v807 = vand.u32 2147483647, %v797
  %vm808 = vcmp.eq.f32.partialorder %v807, 8.507059e+37
  %v809 = vand.u32 %v797, 2147483648
  %v810 = vor.u32 1.1754944e-38, %v809
  %v811 = vsel %vm808, %v810, %v806
  %v812 = vmul.f32 1.0, %v811
  %v813 = vtanh.pop %v793
  %v814 = vmul.f32 %v812, %v674
  %816 = vrot.lane.b32.xlu0 %v813, 64
  %v817 = vpop.permute.xlu0 %816
  %v819 = vmul.f32 %v812, %v817
  %821 = vrot.lane.b32.xlu0 %v819, 32
  %v822 = vpop.permute.xlu0 %821
  %v824 = vadd.f32 %v814, %v822
  %v825 = vtanh.pop %v824
  %827 = vrot.lane.b32.xlu0 %v825, 64
  %v828 = vpop.permute.xlu0 %827
  %v830 = vmul.f32 %v812, %v828
  %833 = vrot.lane.b32.xlu0 %v830, 64
  %v834 = vpop.permute.xlu0 %833
  %v836 = vsel %vm58, %v770, %v834
  %v838 = vsel %vm86, %v836, 0
  %840 = vmatpush.msra.mxu0 0.0
  %841 = vmatpush.msra.mxu0 0.0
  %842 = vmatpush.msra.mxu0 0.0
  %843 = vmatpush.msra.mxu0 0.0
  %844 = vmatpush.msra.mxu0 0.0
  %845 = vmatpush.msra.mxu0 0.0
  %846 = vmatpush.msra.mxu0 0.0
  %847 = vmatpush.msra.mxu0 0.0
  %848 = vmatpush.msra.mxu0 %v43
  %849 = vmatpush.msra.mxu0 %v41
  %850 = vmatpush.msra.mxu0 %v39
  %851 = vmatpush.msra.mxu0 %v37
  %852 = vmatpush.msra.mxu0 %v35
  %853 = vmatpush.msra.mxu0 %v33
  %854 = vmatpush.msra.mxu0 %v31
  %855 = vmatpush.msra.mxu0 %v29
  %856 = vmatmul.f32.gmra.mxu0 %v838
  %v857 = vpop.f32.mrf.mxu0
  %v858 = vadd.f32 0.0, %v857
  %859 = vdwg.mxu0
  %860 = vmatpush.msra.mxu0 0.0
  %861 = vmatpush.msra.mxu0 0.0
  %862 = vmatpush.msra.mxu0 0.0
  %863 = vmatpush.msra.mxu0 0.0
  %864 = vmatpush.msra.mxu0 0.0
  %865 = vmatpush.msra.mxu0 0.0
  %866 = vmatpush.msra.mxu0 0.0
  %867 = vmatpush.msra.mxu0 0.0
  %868 = vmatpush.msra.mxu0 %v44
  %869 = vmatpush.msra.mxu0 %v42
  %870 = vmatpush.msra.mxu0 %v40
  %871 = vmatpush.msra.mxu0 %v38
  %872 = vmatpush.msra.mxu0 %v36
  %873 = vmatpush.msra.mxu0 %v34
  %874 = vmatpush.msra.mxu0 %v32
  %875 = vmatpush.msra.mxu0 %v30
  %876 = vmatmul.f32.gmra.mxu0 %v838
  %v877 = vpop.f32.mrf.mxu0
  %v878 = vadd.f32 0.0, %v877
  %879 = vdwg.mxu0
  %v880 = vadd.f32 %v80, %v858
  %v881 = vxor.u32 %v880, 2147483648
  %v882 = vmul.f32 %v881, 1.442695
  %v883 = vpow.pop %v882
  %v884 = vadd.f32 %v883, 1.0
  %v885 = vrcp.pop %v884
  %v886 = vmul.f32 %v884, %v885
  %v887 = vsub.f32 1.0, %v886
  %v888 = vmul.f32 %v885, %v887
  %v889 = vadd.f32 %v885, %v888
  %vm890 = vweird.f32 %v884
  %vm891 = vweird.f32 %v885
  %vm892 = vmor %vm890, %vm891
  %v893 = vsel %vm892, %v885, %v889
  %v894 = vand.u32 2147483647, %v884
  %vm895 = vcmp.eq.f32.partialorder %v894, 8.507059e+37
  %v896 = vand.u32 %v884, 2147483648
  %v897 = vor.u32 1.1754944e-38, %v896
  %v898 = vsel %vm895, %v897, %v893
  %v899 = vmul.f32 1.0, %v898
  %v900 = vtanh.pop %v880
  %v901 = vmul.f32 %v899, %v761
  %903 = vrot.lane.b32.xlu0 %v900, 64
  %v904 = vpop.permute.xlu0 %903
  %v906 = vmul.f32 %v899, %v904
  %908 = vrot.lane.b32.xlu0 %v906, 32
  %v909 = vpop.permute.xlu0 %908
  %v911 = vadd.f32 %v901, %v909
  %v912 = vtanh.pop %v911
  %914 = vrot.lane.b32.xlu0 %v912, 64
  %v915 = vpop.permute.xlu0 %914
  %v917 = vmul.f32 %v899, %v915
  %919 = vrot.lane.b32.xlu0 %v917, 32
  %v920 = vpop.permute.xlu0 %919
  %v921 = vsel %vm58, %v920, 0
  %923 = vmatpush.msra.mxu0 0.0
  %924 = vmatpush.msra.mxu0 0.0
  %925 = vmatpush.msra.mxu0 0.0
  %926 = vmatpush.msra.mxu0 0.0
  %927 = vmatpush.msra.mxu0 0.0
  %928 = vmatpush.msra.mxu0 0.0
  %929 = vmatpush.msra.mxu0 0.0
  %930 = vmatpush.msra.mxu0 0.0
  %931 = vmatpush.msra.mxu0 0.0
  %932 = vmatpush.msra.mxu0 0.0
  %933 = vmatpush.msra.mxu0 0.0
  %934 = vmatpush.msra.mxu0 0.0
  %935 = vmatpush.msra.mxu0 %v48
  %936 = vmatpush.msra.mxu0 %v47
  %937 = vmatpush.msra.mxu0 %v46
  %938 = vmatpush.msra.mxu0 %v45
  %939 = vmatmul.f32.gmra.mxu0 %v921
  %v940 = vpop.f32.mrf.mxu0
  %v941 = vadd.f32 %v878, %v940
  %942 = vdwg.mxu0
  %v943 = vadd.f32 %v941, %v84
  %v944 = vxor.u32 %v943, 2147483648
  %v945 = vmul.f32 %v944, 1.442695
  %v946 = vpow.pop %v945
  %v947 = vadd.f32 %v946, 1.0
  %v948 = vrcp.pop %v947
  %v949 = vmul.f32 %v947, %v948
  %v950 = vsub.f32 1.0, %v949
  %v951 = vmul.f32 %v948, %v950
  %v952 = vadd.f32 %v948, %v951
  %vm953 = vweird.f32 %v947
  %vm954 = vweird.f32 %v948
  %vm955 = vmor %vm953, %vm954
  %v956 = vsel %vm955, %v948, %v952
  %v957 = vand.u32 2147483647, %v947
  %vm958 = vcmp.eq.f32.partialorder %v957, 8.507059e+37
  %v959 = vand.u32 %v947, 2147483648
  %v960 = vor.u32 1.1754944e-38, %v959
  %v961 = vsel %vm958, %v960, %v956
  %v962 = vmul.f32 1.0, %v961
  %v963 = vtanh.pop %v943
  %v964 = vmul.f32 %v962, %v824
  %966 = vrot.lane.b32.xlu0 %v963, 64
  %v967 = vpop.permute.xlu0 %966
  %v969 = vmul.f32 %v962, %v967
  %971 = vrot.lane.b32.xlu0 %v969, 32
  %v972 = vpop.permute.xlu0 %971
  %v974 = vadd.f32 %v964, %v972
  %v975 = vtanh.pop %v974
  %977 = vrot.lane.b32.xlu0 %v975, 64
  %v978 = vpop.permute.xlu0 %977
  %v980 = vmul.f32 %v962, %v978
  %983 = vrot.lane.b32.xlu0 %v980, 64
  %v984 = vpop.permute.xlu0 %983
  %v986 = vsel %vm58, %v920, %v984
  %v988 = vsel %vm86, %v986, 0
  %990 = vmatpush.msra.mxu0 0.0
  %991 = vmatpush.msra.mxu0 0.0
  %992 = vmatpush.msra.mxu0 0.0
  %993 = vmatpush.msra.mxu0 0.0
  %994 = vmatpush.msra.mxu0 0.0
  %995 = vmatpush.msra.mxu0 0.0
  %996 = vmatpush.msra.mxu0 0.0
  %997 = vmatpush.msra.mxu0 0.0
  %998 = vmatpush.msra.mxu0 %v43
  %999 = vmatpush.msra.mxu0 %v41
  %1000 = vmatpush.msra.mxu0 %v39
  %1001 = vmatpush.msra.mxu0 %v37
  %1002 = vmatpush.msra.mxu0 %v35
  %1003 = vmatpush.msra.mxu0 %v33
  %1004 = vmatpush.msra.mxu0 %v31
  %1005 = vmatpush.msra.mxu0 %v29
  %1006 = vmatmul.f32.gmra.mxu0 %v988
  %v1007 = vpop.f32.mrf.mxu0
  %v1008 = vadd.f32 0.0, %v1007
  %1009 = vdwg.mxu0
  %1010 = vmatpush.msra.mxu0 0.0
  %1011 = vmatpush.msra.mxu0 0.0
  %1012 = vmatpush.msra.mxu0 0.0
  %1013 = vmatpush.msra.mxu0 0.0
  %1014 = vmatpush.msra.mxu0 0.0
  %1015 = vmatpush.msra.mxu0 0.0
  %1016 = vmatpush.msra.mxu0 0.0
  %1017 = vmatpush.msra.mxu0 0.0
  %1018 = vmatpush.msra.mxu0 %v44
  %1019 = vmatpush.msra.mxu0 %v42
  %1020 = vmatpush.msra.mxu0 %v40
  %1021 = vmatpush.msra.mxu0 %v38
  %1022 = vmatpush.msra.mxu0 %v36
  %1023 = vmatpush.msra.mxu0 %v34
  %1024 = vmatpush.msra.mxu0 %v32
  %1025 = vmatpush.msra.mxu0 %v30
  %1026 = vmatmul.f32.gmra.mxu0 %v988
  %v1027 = vpop.f32.mrf.mxu0
  %v1028 = vadd.f32 0.0, %v1027
  %1029 = vdwg.mxu0
  %v1030 = vadd.f32 %v80, %v1008
  %v1031 = vxor.u32 %v1030, 2147483648
  %v1032 = vmul.f32 %v1031, 1.442695
  %v1033 = vpow.pop %v1032
  %v1034 = vadd.f32 %v1033, 1.0
  %v1035 = vrcp.pop %v1034
  %v1036 = vmul.f32 %v1034, %v1035
  %v1037 = vsub.f32 1.0, %v1036
  %v1038 = vmul.f32 %v1035, %v1037
  %v1039 = vadd.f32 %v1035, %v1038
  %vm1040 = vweird.f32 %v1034
  %vm1041 = vweird.f32 %v1035
  %vm1042 = vmor %vm1040, %vm1041
  %v1043 = vsel %vm1042, %v1035, %v1039
  %v1044 = vand.u32 2147483647, %v1034
  %vm1045 = vcmp.eq.f32.partialorder %v1044, 8.507059e+37
  %v1046 = vand.u32 %v1034, 2147483648
  %v1047 = vor.u32 1.1754944e-38, %v1046
  %v1048 = vsel %vm1045, %v1047, %v1043
  %v1049 = vmul.f32 1.0, %v1048
  %v1050 = vtanh.pop %v1030
  %v1051 = vmul.f32 %v1049, %v911
  %1053 = vrot.lane.b32.xlu0 %v1050, 64
  %v1054 = vpop.permute.xlu0 %1053
  %v1056 = vmul.f32 %v1049, %v1054
  %1058 = vrot.lane.b32.xlu0 %v1056, 32
  %v1059 = vpop.permute.xlu0 %1058
  %v1061 = vadd.f32 %v1051, %v1059
  %v1062 = vtanh.pop %v1061
  %1064 = vrot.lane.b32.xlu0 %v1062, 64
  %v1065 = vpop.permute.xlu0 %1064
  %v1067 = vmul.f32 %v1049, %v1065
  %1069 = vrot.lane.b32.xlu0 %v1067, 32
  %v1070 = vpop.permute.xlu0 %1069
  %v1071 = vsel %vm58, %v1070, 0
  %1073 = vmatpush.msra.mxu0 0.0
  %1074 = vmatpush.msra.mxu0 0.0
  %1075 = vmatpush.msra.mxu0 0.0
  %1076 = vmatpush.msra.mxu0 0.0
  %1077 = vmatpush.msra.mxu0 0.0
  %1078 = vmatpush.msra.mxu0 0.0
  %1079 = vmatpush.msra.mxu0 0.0
  %1080 = vmatpush.msra.mxu0 0.0
  %1081 = vmatpush.msra.mxu0 0.0
  %1082 = vmatpush.msra.mxu0 0.0
  %1083 = vmatpush.msra.mxu0 0.0
  %1084 = vmatpush.msra.mxu0 0.0
  %1085 = vmatpush.msra.mxu0 %v48
  %1086 = vmatpush.msra.mxu0 %v47
  %1087 = vmatpush.msra.mxu0 %v46
  %1088 = vmatpush.msra.mxu0 %v45
  %1089 = vmatmul.f32.gmra.mxu0 %v1071
  %v1090 = vpop.f32.mrf.mxu0
  %v1091 = vadd.f32 %v1028, %v1090
  %1092 = vdwg.mxu0
  %v1093 = vadd.f32 %v1091, %v84
  %v1094 = vxor.u32 %v1093, 2147483648
  %v1095 = vmul.f32 %v1094, 1.442695
  %v1096 = vpow.pop %v1095
  %v1097 = vadd.f32 %v1096, 1.0
  %v1098 = vrcp.pop %v1097
  %v1099 = vmul.f32 %v1097, %v1098
  %v1100 = vsub.f32 1.0, %v1099
  %v1101 = vmul.f32 %v1098, %v1100
  %v1102 = vadd.f32 %v1098, %v1101
  %vm1103 = vweird.f32 %v1097
  %vm1104 = vweird.f32 %v1098
  %vm1105 = vmor %vm1103, %vm1104
  %v1106 = vsel %vm1105, %v1098, %v1102
  %v1107 = vand.u32 2147483647, %v1097
  %vm1108 = vcmp.eq.f32.partialorder %v1107, 8.507059e+37
  %v1109 = vand.u32 %v1097, 2147483648
  %v1110 = vor.u32 1.1754944e-38, %v1109
  %v1111 = vsel %vm1108, %v1110, %v1106
  %v1112 = vmul.f32 1.0, %v1111
  %v1113 = vtanh.pop %v1093
  %v1114 = vmul.f32 %v1112, %v974
  %1116 = vrot.lane.b32.xlu0 %v1113, 64
  %v1117 = vpop.permute.xlu0 %1116
  %v1119 = vmul.f32 %v1112, %v1117
  %1121 = vrot.lane.b32.xlu0 %v1119, 32
  %v1122 = vpop.permute.xlu0 %1121
  %v1124 = vadd.f32 %v1114, %v1122
  %v1125 = vtanh.pop %v1124
  %1127 = vrot.lane.b32.xlu0 %v1125, 64
  %v1128 = vpop.permute.xlu0 %1127
  %v1130 = vmul.f32 %v1112, %v1128
  %1133 = vrot.lane.b32.xlu0 %v1130, 64
  %v1134 = vpop.permute.xlu0 %1133
  %v1136 = vsel %vm58, %v1070, %v1134
  %v1138 = vsel %vm86, %v1136, 0
  %1140 = vmatpush.msra.mxu0 0.0
  %1141 = vmatpush.msra.mxu0 0.0
  %1142 = vmatpush.msra.mxu0 0.0
  %1143 = vmatpush.msra.mxu0 0.0
  %1144 = vmatpush.msra.mxu0 0.0
  %1145 = vmatpush.msra.mxu0 0.0
  %1146 = vmatpush.msra.mxu0 0.0
  %1147 = vmatpush.msra.mxu0 0.0
  %1148 = vmatpush.msra.mxu0 %v43
  %1149 = vmatpush.msra.mxu0 %v41
  %1150 = vmatpush.msra.mxu0 %v39
  %1151 = vmatpush.msra.mxu0 %v37
  %1152 = vmatpush.msra.mxu0 %v35
  %1153 = vmatpush.msra.mxu0 %v33
  %1154 = vmatpush.msra.mxu0 %v31
  %1155 = vmatpush.msra.mxu0 %v29
  %1156 = vmatmul.f32.gmra.mxu0 %v1138
  %v1157 = vpop.f32.mrf.mxu0
  %v1158 = vadd.f32 0.0, %v1157
  %1159 = vdwg.mxu0
  %1160 = vmatpush.msra.mxu0 0.0
  %1161 = vmatpush.msra.mxu0 0.0
  %1162 = vmatpush.msra.mxu0 0.0
  %1163 = vmatpush.msra.mxu0 0.0
  %1164 = vmatpush.msra.mxu0 0.0
  %1165 = vmatpush.msra.mxu0 0.0
  %1166 = vmatpush.msra.mxu0 0.0
  %1167 = vmatpush.msra.mxu0 0.0
  %1168 = vmatpush.msra.mxu0 %v44
  %1169 = vmatpush.msra.mxu0 %v42
  %1170 = vmatpush.msra.mxu0 %v40
  %1171 = vmatpush.msra.mxu0 %v38
  %1172 = vmatpush.msra.mxu0 %v36
  %1173 = vmatpush.msra.mxu0 %v34
  %1174 = vmatpush.msra.mxu0 %v32
  %1175 = vmatpush.msra.mxu0 %v30
  %1176 = vmatmul.f32.gmra.mxu0 %v1138
  %v1177 = vpop.f32.mrf.mxu0
  %v1178 = vadd.f32 0.0, %v1177
  %1179 = vdwg.mxu0
  %v1180 = vadd.f32 %v80, %v1158
  %v1181 = vxor.u32 %v1180, 2147483648
  %v1182 = vmul.f32 %v1181, 1.442695
  %v1183 = vpow.pop %v1182
  %v1184 = vadd.f32 %v1183, 1.0
  %v1185 = vrcp.pop %v1184
  %v1186 = vmul.f32 %v1184, %v1185
  %v1187 = vsub.f32 1.0, %v1186
  %v1188 = vmul.f32 %v1185, %v1187
  %v1189 = vadd.f32 %v1185, %v1188
  %vm1190 = vweird.f32 %v1184
  %vm1191 = vweird.f32 %v1185
  %vm1192 = vmor %vm1190, %vm1191
  %v1193 = vsel %vm1192, %v1185, %v1189
  %v1194 = vand.u32 2147483647, %v1184
  %vm1195 = vcmp.eq.f32.partialorder %v1194, 8.507059e+37
  %v1196 = vand.u32 %v1184, 2147483648
  %v1197 = vor.u32 1.1754944e-38, %v1196
  %v1198 = vsel %vm1195, %v1197, %v1193
  %v1199 = vmul.f32 1.0, %v1198
  %v1200 = vtanh.pop %v1180
  %v1201 = vmul.f32 %v1199, %v1061
  %1203 = vrot.lane.b32.xlu0 %v1200, 64
  %v1204 = vpop.permute.xlu0 %1203
  %v1206 = vmul.f32 %v1199, %v1204
  %1208 = vrot.lane.b32.xlu0 %v1206, 32
  %v1209 = vpop.permute.xlu0 %1208
  %v1211 = vadd.f32 %v1201, %v1209
  %v1212 = vtanh.pop %v1211
  %1214 = vrot.lane.b32.xlu0 %v1212, 64
  %v1215 = vpop.permute.xlu0 %1214
  %v1217 = vmul.f32 %v1199, %v1215
  %1219 = vrot.lane.b32.xlu0 %v1217, 32
  %v1220 = vpop.permute.xlu0 %1219
  %v1221 = vsel %vm58, %v1220, 0
  %1223 = vmatpush.msra.mxu0 0.0
  %1224 = vmatpush.msra.mxu0 0.0
  %1225 = vmatpush.msra.mxu0 0.0
  %1226 = vmatpush.msra.mxu0 0.0
  %1227 = vmatpush.msra.mxu0 0.0
  %1228 = vmatpush.msra.mxu0 0.0
  %1229 = vmatpush.msra.mxu0 0.0
  %1230 = vmatpush.msra.mxu0 0.0
  %1231 = vmatpush.msra.mxu0 0.0
  %1232 = vmatpush.msra.mxu0 0.0
  %1233 = vmatpush.msra.mxu0 0.0
  %1234 = vmatpush.msra.mxu0 0.0
  %1235 = vmatpush.msra.mxu0 %v48
  %1236 = vmatpush.msra.mxu0 %v47
  %1237 = vmatpush.msra.mxu0 %v46
  %1238 = vmatpush.msra.mxu0 %v45
  %1239 = vmatmul.f32.gmra.mxu0 %v1221
  %v1240 = vpop.f32.mrf.mxu0
  %v1241 = vadd.f32 %v1178, %v1240
  %1242 = vdwg.mxu0
  %v1243 = vadd.f32 %v1241, %v84
  %v1244 = vxor.u32 %v1243, 2147483648
  %v1245 = vmul.f32 %v1244, 1.442695
  %v1246 = vpow.pop %v1245
  %v1247 = vadd.f32 %v1246, 1.0
  %v1248 = vrcp.pop %v1247
  %v1249 = vmul.f32 %v1247, %v1248
  %v1250 = vsub.f32 1.0, %v1249
  %v1251 = vmul.f32 %v1248, %v1250
  %v1252 = vadd.f32 %v1248, %v1251
  %vm1253 = vweird.f32 %v1247
  %vm1254 = vweird.f32 %v1248
  %vm1255 = vmor %vm1253, %vm1254
  %v1256 = vsel %vm1255, %v1248, %v1252
  %v1257 = vand.u32 2147483647, %v1247
  %vm1258 = vcmp.eq.f32.partialorder %v1257, 8.507059e+37
  %v1259 = vand.u32 %v1247, 2147483648
  %v1260 = vor.u32 1.1754944e-38, %v1259
  %v1261 = vsel %vm1258, %v1260, %v1256
  %v1262 = vmul.f32 1.0, %v1261
  %v1263 = vtanh.pop %v1243
  %v1264 = vmul.f32 %v1262, %v1124
  %1266 = vrot.lane.b32.xlu0 %v1263, 64
  %v1267 = vpop.permute.xlu0 %1266
  %v1269 = vmul.f32 %v1262, %v1267
  %1271 = vrot.lane.b32.xlu0 %v1269, 32
  %v1272 = vpop.permute.xlu0 %1271
  %v1274 = vadd.f32 %v1264, %v1272
  %v1275 = vtanh.pop %v1274
  %1277 = vrot.lane.b32.xlu0 %v1275, 64
  %v1278 = vpop.permute.xlu0 %1277
  %v1280 = vmul.f32 %v1262, %v1278
  %1281 = vrot.lane.b32.xlu0 %v230, 32
  %v1282 = vpop.permute.xlu0 %1281
  %1284 = vrot.lane.b32.xlu0 %v530, 96
  %v1285 = vpop.permute.xlu0 %1284
  %1287 = vrot.lane.b32.xlu0 %v830, 32
  %v1288 = vpop.permute.xlu0 %1287
  %1290 = vrot.lane.b32.xlu0 %v1130, 96
  %v1291 = vpop.permute.xlu0 %1290
  %v1293 = vsel %vm58, %v1282, %v384
  %v1294 = vsel %vm86, %v1293, %v1285
  %vm1295 = vcmask 785408
  %v1296 = vsel %vm1295, %v1294, %v680
  %v1297 = vsel %vm58, %v1288, %v984
  %v1298 = vsel %vm86, %v1297, %v1291
  %v1299 = vsel %vm1295, %v1298, %v1280
  %v1300 = vld [vmem:[%s6] sm:$0xff]
  %v1301 = vld [vmem:[%s6 + $0x8] sm:$0xff]
  %v1302 = vld [vmem:[%s6 + $0x10] sm:$0xff]
  %v1303 = vld [vmem:[%s6 + $0x18] sm:$0xff]
  %v1304 = vld [vmem:[%s6 + $0x20] sm:$0xff]
  %v1305 = vld [vmem:[%s6 + $0x28] sm:$0xff]
  %v1306 = vld [vmem:[%s6 + $0x30] sm:$0xff]
  %v1307 = vld [vmem:[%s6 + $0x38] sm:$0xff]
  %v1308 = vld [vmem:[%s6 + $0x40] sm:$0xff]
  %v1309 = vld [vmem:[%s6 + $0x48] sm:$0xff]
  %v1310 = vld [vmem:[%s6 + $0x50] sm:$0xff]
  %v1311 = vld [vmem:[%s6 + $0x58] sm:$0xff]
  %v1312 = vld [vmem:[%s6 + $0x60] sm:$0xff]
  %v1313 = vld [vmem:[%s6 + $0x68] sm:$0xff]
  %v1314 = vld [vmem:[%s6 + $0x70] sm:$0xff]
  %v1315 = vld [vmem:[%s6 + $0x78] sm:$0xff]
  %v1316 = vld [vmem:[%s6 + $0x80] sm:$0xff]
  %v1317 = vld [vmem:[%s6 + $0x88] sm:$0xff]
  %v1318 = vld [vmem:[%s6 + $0x90] sm:$0xff]
  %v1319 = vld [vmem:[%s6 + $0x98] sm:$0xff]
  %v1320 = vld [vmem:[%s6 + $0xa0] sm:$0xff]
  %v1321 = vld [vmem:[%s6 + $0xa8] sm:$0xff]
  %v1322 = vld [vmem:[%s6 + $0xb0] sm:$0xff]
  %v1323 = vld [vmem:[%s6 + $0xb8] sm:$0xff]
  %v1324 = vld [vmem:[%s6 + $0xc0] sm:$0xff]
  %v1325 = vld [vmem:[%s6 + $0xc8] sm:$0xff]
  %v1326 = vld [vmem:[%s6 + $0xd0] sm:$0xff]
  %v1327 = vld [vmem:[%s6 + $0xd8] sm:$0xff]
  %v1328 = vld [vmem:[%s6 + $0xe0] sm:$0xff]
  %v1329 = vld [vmem:[%s6 + $0xe8] sm:$0xff]
  %v1330 = vld [vmem:[%s6 + $0xf0] sm:$0xff]
  %v1331 = vld [vmem:[%s6 + $0xf8] sm:$0xff]
  %v1332 = vld [vmem:[%s7] sm:$0x1]
  %v1334 = vperm.slane %v1332, 0
  %1336 = vmatpush.msra.mxu0 %v1315
  %1337 = vmatpush.msra.mxu0 %v1314
  %1338 = vmatpush.msra.mxu0 %v1313
  %1339 = vmatpush.msra.mxu0 %v1312
  %1340 = vmatpush.msra.mxu0 %v1311
  %1341 = vmatpush.msra.mxu0 %v1310
  %1342 = vmatpush.msra.mxu0 %v1309
  %1343 = vmatpush.msra.mxu0 %v1308
  %1344 = vmatpush.msra.mxu0 %v1307
  %1345 = vmatpush.msra.mxu0 %v1306
  %1346 = vmatpush.msra.mxu0 %v1305
  %1347 = vmatpush.msra.mxu0 %v1304
  %1348 = vmatpush.msra.mxu0 %v1303
  %1349 = vmatpush.msra.mxu0 %v1302
  %1350 = vmatpush.msra.mxu0 %v1301
  %1351 = vmatpush.msra.mxu0 %v1300
  %1352 = vmatmul.f32.gmra.mxu0 %v1296
  %v1353 = vpop.f32.mrf.mxu0
  %v1354 = vadd.f32 %v1334, %v1353
  %1355 = vdwg.mxu0
  %1356 = vmatpush.msra.mxu0 %v1331
  %1357 = vmatpush.msra.mxu0 %v1330
  %1358 = vmatpush.msra.mxu0 %v1329
  %1359 = vmatpush.msra.mxu0 %v1328
  %1360 = vmatpush.msra.mxu0 %v1327
  %1361 = vmatpush.msra.mxu0 %v1326
  %1362 = vmatpush.msra.mxu0 %v1325
  %1363 = vmatpush.msra.mxu0 %v1324
  %1364 = vmatpush.msra.mxu0 %v1323
  %1365 = vmatpush.msra.mxu0 %v1322
  %1366 = vmatpush.msra.mxu0 %v1321
  %1367 = vmatpush.msra.mxu0 %v1320
  %1368 = vmatpush.msra.mxu0 %v1319
  %1369 = vmatpush.msra.mxu0 %v1318
  %1370 = vmatpush.msra.mxu0 %v1317
  %1371 = vmatpush.msra.mxu0 %v1316
  %1372 = vmatmul.f32.gmra.mxu0 %v1299
  %v1373 = vpop.f32.mrf.mxu0
  %v1374 = vadd.f32 %v1354, %v1373
  %1375 = vdwg.mxu0
  %v1376 = vxor.u32 %v1374, 2147483648
  %v1377 = vmul.f32 %v1376, 1.442695
  %v1378 = vpow.pop %v1377
  %v1379 = vadd.f32 %v1378, 1.0
  %v1380 = vrcp.pop %v1379
  %v1381 = vmul.f32 %v1379, %v1380
  %v1382 = vsub.f32 1.0, %v1381
  %v1383 = vmul.f32 %v1380, %v1382
  %v1384 = vadd.f32 %v1380, %v1383
  %vm1385 = vweird.f32 %v1379
  %vm1386 = vweird.f32 %v1380
  %vm1387 = vmor %vm1385, %vm1386
  %v1388 = vsel %vm1387, %v1380, %v1384
  %v1389 = vand.u32 2147483647, %v1379
  %vm1390 = vcmp.eq.f32.partialorder %v1389, 8.507059e+37
  %v1391 = vand.u32 %v1379, 2147483648
  %v1392 = vor.u32 1.1754944e-38, %v1391
  %v1393 = vsel %vm1390, %v1392, %v1388
  %v1394 = vmul.f32 1.0, %v1393
  %vm1395 = vcmask 517120
  %1396 = vst.msk [vmem:[%s8] sm:$0x3] %vm1395, %v1394
  // Predicated region
  $region34: #{arae_decoder_forward.1} parent=0 // pred_check
    _
  $region35: #{arae_decoder_forward.1} parent=0 // pred_check_branch
    %1398 = sbr.rel (0) target = $region37
  $region36: #{arae_decoder_forward.1} parent=0 // pred_region
    _
  $region37: #{arae_decoder_forward.1} parent=0 // pred_fallthru
    _
  // Predicated region
  $region38: #{arae_decoder_forward.1} parent=0 // pred_check
    _
  $region39: #{arae_decoder_forward.1} parent=0 // pred_check_branch
    %1400 = sbr.rel (0) target = $region41
  $region40: #{arae_decoder_forward.1} parent=0 // pred_region
    _
  $region41: #{arae_decoder_forward.1} parent=0 // pred_fallthru
    _

</llo_original>
